<compile_context>
chip_gen: v6e
topology: v6e:2x2x1
jax: 0.10.0
libtpu: 0.0.40
codegen_flags: <defaults>
</compile_context>

<pallas_src>
import jax
import jax.numpy as jnp
from jax.experimental import pallas as pl
from jax.experimental.pallas import tpu as pltpu


def vae_kernel(x_ref, w1_ref, b1_ref, wml_ref, bml_ref,
               wd1_ref, bd1_ref, wd2_ref, bd2_ref, eps_ref,
               recon_ref, musig_ref):
    L = eps_ref.shape[-1]

    x = x_ref[...]

    # ---------------- encoder ----------------
    h = jnp.dot(x.astype(jnp.bfloat16), w1_ref[...],
                preferred_element_type=jnp.float32) + b1_ref[...]
    h = jnp.maximum(h, 0.0)

    # Fused [mu | logvar] projection: one (TILE_B, H) x (H, 2L) matmul.
    ml = jnp.dot(h.astype(jnp.bfloat16), wml_ref[...],
                 preferred_element_type=jnp.float32) + bml_ref[...]
    mu = ml[:, :L]
    sigma = jnp.exp(0.5 * ml[:, L:])

    # Reparameterization with supplied (deterministic) eps.
    z = mu + sigma * eps_ref[...]

    # ---------------- decoder ----------------
    hd = jnp.dot(z.astype(jnp.bfloat16), wd1_ref[...],
                 preferred_element_type=jnp.float32) + bd1_ref[...]
    hd = jnp.maximum(hd, 0.0)

    logits = jnp.dot(hd.astype(jnp.bfloat16), wd2_ref[...],
                     preferred_element_type=jnp.float32) + bd2_ref[...]
    recon = jax.nn.sigmoid(logits)

    # Lane-dense stores: recon is [TILE_B, D_in], mu|sigma is [TILE_B, 2L].
    recon_ref[...] = recon.astype(recon_ref.dtype)
    musig_ref[...] = jnp.concatenate([mu, sigma], axis=-1).astype(musig_ref.dtype)


def simple_autoencoder_forward(x, params, eps, *, tile_b=128):
    """x: [B, D_in] f32, eps: [B, L] f32.
    Returns (recon [B, D_in], mu [B, L], sigma [B, L]), all f32."""
    B, D_in = x.shape
    H = params["w1"].shape[1]
    L = params["wd1"].shape[0]
    assert params["wml"].shape == (H, 2 * L)

    tile_b = min(tile_b, B)
    assert B % tile_b == 0, "batch must be divisible by the batch tile"
    grid = (B // tile_b,)

    batch_spec = lambda n: pl.BlockSpec((tile_b, n), lambda i: (i, 0))
    resident = lambda shape: pl.BlockSpec(shape, lambda i: (0, 0))

    in_specs = [
        batch_spec(D_in),                      # x
        resident(params["w1"].shape),          # w1  (bf16)
        resident(params["b1"].shape),          # b1  (f32)
        resident(params["wml"].shape),         # wml (bf16, fused mu|logvar)
        resident(params["bml"].shape),         # bml (f32)
        resident(params["wd1"].shape),         # wd1 (bf16)
        resident(params["bd1"].shape),         # bd1 (f32)
        resident(params["wd2"].shape),         # wd2 (bf16)
        resident(params["bd2"].shape),         # bd2 (f32)
        batch_spec(L),                         # eps
    ]
    out_specs = (
        batch_spec(D_in),                      # recon
        batch_spec(2 * L),                     # mu | sigma slab
    )

    recon, musig = pl.pallas_call(
        vae_kernel,
        grid=grid,
        in_specs=in_specs,
        out_specs=out_specs,
        out_shape=(
            jax.ShapeDtypeStruct((B, D_in), jnp.float32),
            jax.ShapeDtypeStruct((B, 2 * L), jnp.float32),
        ),
        compiler_params=pltpu.CompilerParams(
            dimension_semantics=("parallel",)),
    )(
        x,
        params["w1"], params["b1"],
        params["wml"], params["bml"],
        params["wd1"], params["bd1"],
        params["wd2"], params["bd2"],
        eps,
    )
    mu = musig[:, :L]
    sigma = musig[:, L:]
    return recon, mu, sigma


def init_params(key, d_in, hidden, latent):
    ks = jax.random.split(key, 5)
    scale = lambda fan_in: 1.0 / jnp.sqrt(jnp.float32(fan_in))
    wmu = jax.random.normal(ks[1], (hidden, latent), jnp.float32) * scale(hidden)
    wlv = jax.random.normal(ks[2], (hidden, latent), jnp.float32) * scale(hidden)
    p = {
        # Weights stored in bf16 (matmul operands); biases stay f32.
        "w1":  (jax.random.normal(ks[0], (d_in, hidden), jnp.float32)
                * scale(d_in)).astype(jnp.bfloat16),
        "b1":  jnp.zeros((1, hidden), jnp.float32),
        "wml": jnp.concatenate([wmu, wlv], axis=1).astype(jnp.bfloat16),
        "bml": jnp.zeros((1, 2 * latent), jnp.float32),
        "wd1": (jax.random.normal(ks[3], (latent, hidden), jnp.float32)
                * scale(latent)).astype(jnp.bfloat16),
        "bd1": jnp.zeros((1, hidden), jnp.float32),
        "wd2": (jax.random.normal(ks[4], (hidden, d_in), jnp.float32)
                * scale(hidden)).astype(jnp.bfloat16),
        "bd2": jnp.zeros((1, d_in), jnp.float32),
    }
    return p


def reference_forward(x, params, eps):
    """Pure-JAX reference with identical bf16-operand / f32-accum numerics."""
    f32 = jnp.float32
    L = eps.shape[-1]
    h = jnp.maximum(
        jnp.dot(x.astype(jnp.bfloat16), params["w1"],
                preferred_element_type=f32) + params["b1"], 0.0)
    ml = jnp.dot(h.astype(jnp.bfloat16), params["wml"],
                 preferred_element_type=f32) + params["bml"]
    mu = ml[:, :L]
    sigma = jnp.exp(0.5 * ml[:, L:])
    z = mu + sigma * eps
    hd = jnp.maximum(
        jnp.dot(z.astype(jnp.bfloat16), params["wd1"],
                preferred_element_type=f32) + params["bd1"], 0.0)
    recon = jax.nn.sigmoid(
        jnp.dot(hd.astype(jnp.bfloat16), params["wd2"],
                preferred_element_type=f32) + params["bd2"])
    return recon, mu, sigma


if __name__ == "__main__":
    # Lane-dense shapes: feature dims multiples of 128 (2*LATENT = 128),
    # batch tiled at 128 so the grid has >1 step to pipeline.
    B, D_IN, HIDDEN, LATENT = 256, 128, 128, 64

    key = jax.random.PRNGKey(0)
    k_x, k_eps, k_p = jax.random.split(key, 3)

    x = jax.random.normal(k_x, (B, D_IN), jnp.float32)
    eps = jax.random.normal(k_eps, (B, LATENT), jnp.float32)
    params = init_params(k_p, D_IN, HIDDEN, LATENT)

    recon, mu, sigma = simple_autoencoder_forward(x, params, eps, tile_b=128)
    jax.block_until_ready((recon, mu, sigma))

    r_ref, mu_ref, s_ref = reference_forward(x, params, eps)
    assert recon.shape == (B, D_IN) and mu.shape == (B, LATENT) and sigma.shape == (B, LATENT)
    assert jnp.allclose(recon, r_ref, atol=1e-2, rtol=1e-2)
    assert jnp.allclose(mu, mu_ref, atol=1e-2, rtol=1e-2)
    assert jnp.allclose(sigma, s_ref, atol=1e-2, rtol=1e-2)

    print("KERNEL_OK")
</pallas_src>

<mosaic_0001>
module attributes {stable_mosaic.version = 11 : i64} {
  func.func @vae_kernel(%arg0: i32, %arg1: memref<128x128xf32, #tpu.memory_space<vmem>>, %arg2: memref<128x128xbf16, #tpu.memory_space<vmem>>, %arg3: memref<1x128xf32, #tpu.memory_space<vmem>>, %arg4: memref<128x128xbf16, #tpu.memory_space<vmem>>, %arg5: memref<1x128xf32, #tpu.memory_space<vmem>>, %arg6: memref<64x128xbf16, #tpu.memory_space<vmem>>, %arg7: memref<1x128xf32, #tpu.memory_space<vmem>>, %arg8: memref<128x128xbf16, #tpu.memory_space<vmem>>, %arg9: memref<1x128xf32, #tpu.memory_space<vmem>>, %arg10: memref<128x64xf32, #tpu.memory_space<vmem>>, %arg11: memref<128x128xf32, #tpu.memory_space<vmem>>, %arg12: memref<128x128xf32, #tpu.memory_space<vmem>>) attributes {dimension_semantics = [#tpu.dimension_semantics<parallel>], iteration_bounds = array<i64: 2>, scalar_prefetch = 0 : i64, scratch_operands = 0 : i64, tpu.core_type = #tpu.core_type<tc>, window_params = [{transform_indices = @transform_0, window_bounds = array<i64: 128, 128>}, {pipeline_mode = #tpu.pipeline_mode<synchronous>, transform_indices = @transform_1, window_bounds = array<i64: 128, 128>}, {pipeline_mode = #tpu.pipeline_mode<synchronous>, transform_indices = @transform_2, window_bounds = array<i64: 1, 128>}, {pipeline_mode = #tpu.pipeline_mode<synchronous>, transform_indices = @transform_3, window_bounds = array<i64: 128, 128>}, {pipeline_mode = #tpu.pipeline_mode<synchronous>, transform_indices = @transform_4, window_bounds = array<i64: 1, 128>}, {pipeline_mode = #tpu.pipeline_mode<synchronous>, transform_indices = @transform_5, window_bounds = array<i64: 64, 128>}, {pipeline_mode = #tpu.pipeline_mode<synchronous>, transform_indices = @transform_6, window_bounds = array<i64: 1, 128>}, {pipeline_mode = #tpu.pipeline_mode<synchronous>, transform_indices = @transform_7, window_bounds = array<i64: 128, 128>}, {pipeline_mode = #tpu.pipeline_mode<synchronous>, transform_indices = @transform_8, window_bounds = array<i64: 1, 128>}, {transform_indices = @transform_9, window_bounds = array<i64: 128, 64>}, {transform_indices = @transform_10, window_bounds = array<i64: 128, 128>}, {transform_indices = @transform_11, window_bounds = array<i64: 128, 128>}]} {
    %c0 = arith.constant 0 : index
    %c0_0 = arith.constant 0 : index
    %0 = vector.load %arg1[%c0, %c0_0] : memref<128x128xf32, #tpu.memory_space<vmem>>, vector<128x128xf32>
    %1 = arith.truncf %0 : vector<128x128xf32> to vector<128x128xbf16>
    %c0_1 = arith.constant 0 : index
    %c0_2 = arith.constant 0 : index
    %2 = vector.load %arg2[%c0_1, %c0_2] : memref<128x128xbf16, #tpu.memory_space<vmem>>, vector<128x128xbf16>
    %cst = arith.constant dense<0.000000e+00> : vector<128x128xf32>
    %3 = tpu.matmul %1, %2, %cst {dimension_numbers = #tpu.dot_dimension_numbers<[1], [0], [0], [1], [0, 0, 1, 1], [], []>} : vector<128x128xbf16>, vector<128x128xbf16>, vector<128x128xf32> -> vector<128x128xf32>
    %c0_3 = arith.constant 0 : index
    %c0_4 = arith.constant 0 : index
    %4 = vector.load %arg3[%c0_3, %c0_4] : memref<1x128xf32, #tpu.memory_space<vmem>>, vector<1x128xf32>
    %5 = vector.broadcast %4 : vector<1x128xf32> to vector<128x128xf32>
    %6 = arith.addf %3, %5 : vector<128x128xf32>
    %cst_5 = arith.constant 0.000000e+00 : f32
    %7 = vector.broadcast %cst_5 : f32 to vector<128x128xf32>
    %8 = arith.maximumf %6, %7 : vector<128x128xf32>
    %9 = arith.truncf %8 : vector<128x128xf32> to vector<128x128xbf16>
    %c0_6 = arith.constant 0 : index
    %c0_7 = arith.constant 0 : index
    %10 = vector.load %arg4[%c0_6, %c0_7] : memref<128x128xbf16, #tpu.memory_space<vmem>>, vector<128x128xbf16>
    %cst_8 = arith.constant dense<0.000000e+00> : vector<128x128xf32>
    %11 = tpu.matmul %9, %10, %cst_8 {dimension_numbers = #tpu.dot_dimension_numbers<[1], [0], [0], [1], [0, 0, 1, 1], [], []>} : vector<128x128xbf16>, vector<128x128xbf16>, vector<128x128xf32> -> vector<128x128xf32>
    %c0_9 = arith.constant 0 : index
    %c0_10 = arith.constant 0 : index
    %12 = vector.load %arg5[%c0_9, %c0_10] : memref<1x128xf32, #tpu.memory_space<vmem>>, vector<1x128xf32>
    %13 = vector.broadcast %12 : vector<1x128xf32> to vector<128x128xf32>
    %14 = arith.addf %11, %13 : vector<128x128xf32>
    %15 = vector.extract_strided_slice %14 {offsets = [0, 0], sizes = [128, 64], strides = [1, 1]} : vector<128x128xf32> to vector<128x64xf32>
    %16 = vector.extract_strided_slice %14 {offsets = [0, 64], sizes = [128, 64], strides = [1, 1]} : vector<128x128xf32> to vector<128x64xf32>
    %cst_11 = arith.constant 5.000000e-01 : f32
    %17 = vector.broadcast %cst_11 : f32 to vector<128x64xf32>
    %18 = arith.mulf %17, %16 : vector<128x64xf32>
    %19 = math.exp %18 : vector<128x64xf32>
    %c0_12 = arith.constant 0 : index
    %c0_13 = arith.constant 0 : index
    %20 = vector.load %arg10[%c0_12, %c0_13] : memref<128x64xf32, #tpu.memory_space<vmem>>, vector<128x64xf32>
    %21 = arith.mulf %19, %20 : vector<128x64xf32>
    %22 = arith.addf %15, %21 : vector<128x64xf32>
    %23 = arith.truncf %22 : vector<128x64xf32> to vector<128x64xbf16>
    %c0_14 = arith.constant 0 : index
    %c0_15 = arith.constant 0 : index
    %24 = vector.load %arg6[%c0_14, %c0_15] : memref<64x128xbf16, #tpu.memory_space<vmem>>, vector<64x128xbf16>
    %cst_16 = arith.constant dense<0.000000e+00> : vector<128x128xf32>
    %25 = tpu.matmul %23, %24, %cst_16 {dimension_numbers = #tpu.dot_dimension_numbers<[1], [0], [0], [1], [0, 0, 1, 1], [], []>} : vector<128x64xbf16>, vector<64x128xbf16>, vector<128x128xf32> -> vector<128x128xf32>
    %c0_17 = arith.constant 0 : index
    %c0_18 = arith.constant 0 : index
    %26 = vector.load %arg7[%c0_17, %c0_18] : memref<1x128xf32, #tpu.memory_space<vmem>>, vector<1x128xf32>
    %27 = vector.broadcast %26 : vector<1x128xf32> to vector<128x128xf32>
    %28 = arith.addf %25, %27 : vector<128x128xf32>
    %cst_19 = arith.constant 0.000000e+00 : f32
    %29 = vector.broadcast %cst_19 : f32 to vector<128x128xf32>
    %30 = arith.maximumf %28, %29 : vector<128x128xf32>
    %31 = arith.truncf %30 : vector<128x128xf32> to vector<128x128xbf16>
    %c0_20 = arith.constant 0 : index
    %c0_21 = arith.constant 0 : index
    %32 = vector.load %arg8[%c0_20, %c0_21] : memref<128x128xbf16, #tpu.memory_space<vmem>>, vector<128x128xbf16>
    %cst_22 = arith.constant dense<0.000000e+00> : vector<128x128xf32>
    %33 = tpu.matmul %31, %32, %cst_22 {dimension_numbers = #tpu.dot_dimension_numbers<[1], [0], [0], [1], [0, 0, 1, 1], [], []>} : vector<128x128xbf16>, vector<128x128xbf16>, vector<128x128xf32> -> vector<128x128xf32>
    %c0_23 = arith.constant 0 : index
    %c0_24 = arith.constant 0 : index
    %34 = vector.load %arg9[%c0_23, %c0_24] : memref<1x128xf32, #tpu.memory_space<vmem>>, vector<1x128xf32>
    %35 = vector.broadcast %34 : vector<1x128xf32> to vector<128x128xf32>
    %36 = arith.addf %33, %35 : vector<128x128xf32>
    %37 = arith.negf %36 : vector<128x128xf32>
    %38 = math.exp %37 : vector<128x128xf32>
    %cst_25 = arith.constant 1.000000e+00 : f32
    %39 = vector.broadcast %cst_25 : f32 to vector<128x128xf32>
    %40 = arith.addf %39, %38 : vector<128x128xf32>
    %41 = arith.divf %39, %40 : vector<128x128xf32>
    %c0_26 = arith.constant 0 : index
    %c0_27 = arith.constant 0 : index
    %42 = vector.load %arg11[%c0_26, %c0_27] : memref<128x128xf32, #tpu.memory_space<vmem>>, vector<128x128xf32>
    tpu.vector_store %arg11[%c0_26, %c0_27], %41 {strides = array<i32>} : memref<128x128xf32, #tpu.memory_space<vmem>>, vector<128x128xf32>,
    %43 = tpu.concatenate %15, %19 in 1 : vector<128x64xf32>, vector<128x64xf32> -> vector<128x128xf32>
    %c0_28 = arith.constant 0 : index
    %c0_29 = arith.constant 0 : index
    %44 = vector.load %arg12[%c0_28, %c0_29] : memref<128x128xf32, #tpu.memory_space<vmem>>, vector<128x128xf32>
    tpu.vector_store %arg12[%c0_28, %c0_29], %43 {strides = array<i32>} : memref<128x128xf32, #tpu.memory_space<vmem>>, vector<128x128xf32>,
    return
  }
  func.func @transform_0(%arg0: i32) -> (i32, i32) {
    %c0_i32 = arith.constant 0 : i32
    %c0_i32_0 = arith.constant 0 : i32
    return %arg0, %c0_i32 : i32, i32
  }
  func.func @transform_1(%arg0: i32) -> (i32, i32) {
    %c0_i32 = arith.constant 0 : i32
    %c0_i32_0 = arith.constant 0 : i32
    %c0_i32_1 = arith.constant 0 : i32
    return %c0_i32, %c0_i32_0 : i32, i32
  }
  func.func @transform_2(%arg0: i32) -> (i32, i32) {
    %c0_i32 = arith.constant 0 : i32
    %c0_i32_0 = arith.constant 0 : i32
    %c0_i32_1 = arith.constant 0 : i32
    return %c0_i32, %c0_i32_0 : i32, i32
  }
  func.func @transform_3(%arg0: i32) -> (i32, i32) {
    %c0_i32 = arith.constant 0 : i32
    %c0_i32_0 = arith.constant 0 : i32
    %c0_i32_1 = arith.constant 0 : i32
    return %c0_i32, %c0_i32_0 : i32, i32
  }
  func.func @transform_4(%arg0: i32) -> (i32, i32) {
    %c0_i32 = arith.constant 0 : i32
    %c0_i32_0 = arith.constant 0 : i32
    %c0_i32_1 = arith.constant 0 : i32
    return %c0_i32, %c0_i32_0 : i32, i32
  }
  func.func @transform_5(%arg0: i32) -> (i32, i32) {
    %c0_i32 = arith.constant 0 : i32
    %c0_i32_0 = arith.constant 0 : i32
    %c0_i32_1 = arith.constant 0 : i32
    return %c0_i32, %c0_i32_0 : i32, i32
  }
  func.func @transform_6(%arg0: i32) -> (i32, i32) {
    %c0_i32 = arith.constant 0 : i32
    %c0_i32_0 = arith.constant 0 : i32
    %c0_i32_1 = arith.constant 0 : i32
    return %c0_i32, %c0_i32_0 : i32, i32
  }
  func.func @transform_7(%arg0: i32) -> (i32, i32) {
    %c0_i32 = arith.constant 0 : i32
    %c0_i32_0 = arith.constant 0 : i32
    %c0_i32_1 = arith.constant 0 : i32
    return %c0_i32, %c0_i32_0 : i32, i32
  }
  func.func @transform_8(%arg0: i32) -> (i32, i32) {
    %c0_i32 = arith.constant 0 : i32
    %c0_i32_0 = arith.constant 0 : i32
    %c0_i32_1 = arith.constant 0 : i32
    return %c0_i32, %c0_i32_0 : i32, i32
  }
  func.func @transform_9(%arg0: i32) -> (i32, i32) {
    %c0_i32 = arith.constant 0 : i32
    %c0_i32_0 = arith.constant 0 : i32
    return %arg0, %c0_i32 : i32, i32
  }
  func.func @transform_10(%arg0: i32) -> (i32, i32) {
    %c0_i32 = arith.constant 0 : i32
    %c0_i32_0 = arith.constant 0 : i32
    return %arg0, %c0_i32 : i32, i32
  }
  func.func @transform_11(%arg0: i32) -> (i32, i32) {
    %c0_i32 = arith.constant 0 : i32
    %c0_i32_0 = arith.constant 0 : i32
    return %arg0, %c0_i32 : i32, i32
  }
}

</mosaic_0001>

<llo_original>
// kernel: tpu_custom_call.1
$region0: #{tpu_custom_call.1}
  #allocation0 [shape = 'u32[]', space=smem, size = 0x4, offset = 0x4, fixed_abs, tag = 'smem constant byte address 0x4 - core index']
  #allocation1 [shape = 'u32[144,128]{1,0:T(1,128)}', space=vmem, size = 0x12000, scoped, tag = 'internal scratch']
  %s0 = inlined_call_operand.vmem [shape: f32[256,128], index: 0, kind: input, shape index: {}]
  %s1 = inlined_call_operand.vmem [shape: bf16[128,128], index: 1, kind: input, shape index: {}]
  %s2 = inlined_call_operand.hbm [shape: f32[1,128], index: 2, kind: input, shape index: {}]
  %s3 = inlined_call_operand.vmem [shape: bf16[128,128], index: 3, kind: input, shape index: {}]
  %s4 = inlined_call_operand.vmem [shape: f32[1,128], index: 4, kind: input, shape index: {}]
  %s5 = inlined_call_operand.hbm [shape: bf16[64,128], index: 5, kind: input, shape index: {}]
  %s6 = inlined_call_operand.vmem [shape: f32[1,128], index: 6, kind: input, shape index: {}]
  %s7 = inlined_call_operand.hbm [shape: bf16[128,128], index: 7, kind: input, shape index: {}]
  %s8 = inlined_call_operand.vmem [shape: f32[1,128], index: 8, kind: input, shape index: {}]
  %s9 = inlined_call_operand.vmem [shape: f32[256,64], index: 9, kind: input, shape index: {}]
  %s10 = inlined_call_operand.hbm [shape: f32[256,128], index: 10, kind: output, shape index: {0}]
  %s11 = inlined_call_operand.hbm [shape: f32[256,128], index: 11, kind: output, shape index: {1}]
  %12 = xla_tuple %s10, %s11
  %s13 = sld [smem:[#allocation0]]
  $region93: #{tpu_custom_call.1} parent=0
    _
  %s15 = ssub.s32 1, %s13
  %s16 = scalar_select 0, %s15, %s13
  $region1: #{tpu_custom_call.1} parent=0
    #allocation2 [shape = 'u8[512]{0}', space=vmem, size = 0x400, scoped, tag = 'input window, operand 2, single buffered']
    #allocation3 [shape = 's32[2]{0}', space=sflag, size = 0x8, scoped, tag = 'scoped memory for tpu_custom_call.1']
    #allocation4 [shape = 's32[2]{0}', space=sflag, size = 0x8, scoped, tag = 'scoped memory for tpu_custom_call.1']
    #allocation5 [shape = 'u8[16384]{0}', space=vmem, size = 0x4000, scoped, tag = 'input window, operand 5, single buffered']
    #allocation6 [shape = 's32[1]{0}', space=sflag, size = 0x4, scoped, tag = 'scoped memory for tpu_custom_call.1']
    #allocation7 [shape = 'u8[32768]{0}', space=vmem, size = 0x8000, scoped, tag = 'input window, operand 7, single buffered']
    #allocation8 [shape = 'u8[131072]{0}', space=vmem, size = 0x20000, scoped, tag = 'output window, operand 0']
    #allocation9 [shape = 'u8[131072]{0}', space=vmem, size = 0x20000, scoped, tag = 'output window, operand 1']
    #allocation10 [shape = 's32[2]{0}', space=sflag, size = 0x8, scoped, tag = 'scoped memory for tpu_custom_call.1']
    %17 = vsyncpa [#allocation3], 0
    %18 = vsyncpa [#allocation6], 0
    %19 = vsyncpa [#allocation4], 0
    %s20 = scalar_lea.sflag [#allocation4], 1
    %21 = vsyncpa %s20, 0
    %22 = vsyncpa [#allocation10], 0
    %s23 = scalar_lea.sflag [#allocation10], 1
    %24 = vsyncpa %s23, 0
    loop: start=0, step=1, limit=4
    $region2: #{tpu_custom_call.1} parent=1 // loop_pre_header
      _
    $region3: #{tpu_custom_call.1} parent=1 // loop_header
      %s26 = sphi 0, %s30
      %p27 = scmp.ge.s32.totalorder %s26, 4
      %s36 = sphi 0, %s38
      %s39 = sphi 0, %s36
      %s40 = sphi 0, %s39
      %s56 = sphi 0, %s40
      %s60 = sphi 0, %s60
      %s62 = sphi 0, %s60
      %s63 = sphi 0, %s62
      %s77 = sphi 0, %s63
      %s81 = sphi 0, %s81
      %s83 = sphi 0, %s81
      %s84 = sphi 0, %s83
      %s98 = sphi 0, %s84
      %s102 = sphi 0, %s102
      %s104 = sphi 0, %s102
      %s105 = sphi 0, %s104
      %s119 = sphi 0, %s105
      %s123 = sphi 0, %s123
      %s125 = sphi 0, %s123
      %s126 = sphi 0, %s125
      %s140 = sphi 0, %s126
      %s144 = sphi 0, %s144
      %s146 = sphi 0, %s144
      %s147 = sphi 0, %s146
      %s161 = sphi 0, %s147
      %s165 = sphi 0, %s165
      %s167 = sphi 0, %s165
      %s168 = sphi 0, %s167
      %s182 = sphi 0, %s168
      %s186 = sphi 0, %s186
      %s188 = sphi 0, %s186
      %s189 = sphi 0, %s188
      %s203 = sphi 0, %s189
      %s207 = sphi 0, %s207
      %s209 = sphi 0, %s207
      %s210 = sphi 0, %s209
      %s224 = sphi 0, %s210
      %s230 = sphi 0, %s232
      %s233 = sphi 0, %s230
      %s234 = sphi 0, %s233
      %s250 = sphi 0, %s234
      %s256 = sphi 0, %s258
      %s259 = sphi 0, %s256
      %s260 = sphi 0, %s259
      %s276 = sphi 0, %s260
      %s282 = sphi 0, %s284
      %s285 = sphi 0, %s282
      %s286 = sphi 0, %s285
      %s302 = sphi 0, %s286
    $region4: #{tpu_custom_call.1} parent=1 // loop_header_branch
      %29 = sbr.rel (%p27) target = $region8
    $region5: #{tpu_custom_call.1} parent=1 // loop_body
      %s31 = ssub.s32 %s26, 1
      %s32 = ssub.s32 %s26, 2
      %s33 = sadd.s32 %s26, 1
      %s34 = ssub.s32 %s26, %s33
      %p35 = scmp.eq.s32.totalorder %s34, 0
      %s37 = sadd.s32 %s36, 1
      %s38 = scalar_select %p35, %s36, %s37
      %p41 = pneg %p35
      %p42 = scmp.eq.s32.totalorder %s26, 1
      %p43 = por %p41, %p42
      %p44 = scmp.ne.s32.totalorder %s36, %s39
      %p45 = scmp.eq.s32.totalorder %s26, 0
      %p46 = por %p44, %p45
      %p47 = scmp.ne.s32.totalorder %s36, %s39
      %p48 = scmp.eq.s32.totalorder %s31, 1
      %p49 = por %p47, %p48
      %p50 = scmp.ne.s32.totalorder %s39, %s40
      %p51 = scmp.eq.s32.totalorder %s31, 0
      %p52 = por %p50, %p51
      %p53 = scmp.ne.s32.totalorder %s39, %s40
      %p54 = scmp.eq.s32.totalorder %s32, 1
      %p55 = por %p53, %p54
      %p57 = scmp.ne.s32.totalorder %s40, %s56
      %p58 = scmp.eq.s32.totalorder %s32, 0
      %p59 = por %p57, %p58
      %s61 = sadd.s32 %s60, 1
      %p64 = scmp.eq.s32.totalorder %s26, 1
      %p65 = scmp.ne.s32.totalorder %s60, %s62
      %p66 = scmp.eq.s32.totalorder %s26, 0
      %p67 = por %p65, %p66
      %p68 = scmp.ne.s32.totalorder %s60, %s62
      %p69 = scmp.eq.s32.totalorder %s31, 1
      %p70 = por %p68, %p69
      %p71 = scmp.ne.s32.totalorder %s62, %s63
      %p72 = scmp.eq.s32.totalorder %s31, 0
      %p73 = por %p71, %p72
      %p74 = scmp.ne.s32.totalorder %s62, %s63
      %p75 = scmp.eq.s32.totalorder %s32, 1
      %p76 = por %p74, %p75
      %p78 = scmp.ne.s32.totalorder %s63, %s77
      %p79 = scmp.eq.s32.totalorder %s32, 0
      %p80 = por %p78, %p79
      %s82 = sadd.s32 %s81, 1
      %p85 = scmp.eq.s32.totalorder %s26, 1
      %p86 = scmp.ne.s32.totalorder %s81, %s83
      %p87 = scmp.eq.s32.totalorder %s26, 0
      %p88 = por %p86, %p87
      %p89 = scmp.ne.s32.totalorder %s81, %s83
      %p90 = scmp.eq.s32.totalorder %s31, 1
      %p91 = por %p89, %p90
      %p92 = scmp.ne.s32.totalorder %s83, %s84
      %p93 = scmp.eq.s32.totalorder %s31, 0
      %p94 = por %p92, %p93
      %p95 = scmp.ne.s32.totalorder %s83, %s84
      %p96 = scmp.eq.s32.totalorder %s32, 1
      %p97 = por %p95, %p96
      %p99 = scmp.ne.s32.totalorder %s84, %s98
      %p100 = scmp.eq.s32.totalorder %s32, 0
      %p101 = por %p99, %p100
      %s103 = sadd.s32 %s102, 1
      %p106 = scmp.eq.s32.totalorder %s26, 1
      %p107 = scmp.ne.s32.totalorder %s102, %s104
      %p108 = scmp.eq.s32.totalorder %s26, 0
      %p109 = por %p107, %p108
      %p110 = scmp.ne.s32.totalorder %s102, %s104
      %p111 = scmp.eq.s32.totalorder %s31, 1
      %p112 = por %p110, %p111
      %p113 = scmp.ne.s32.totalorder %s104, %s105
      %p114 = scmp.eq.s32.totalorder %s31, 0
      %p115 = por %p113, %p114
      %p116 = scmp.ne.s32.totalorder %s104, %s105
      %p117 = scmp.eq.s32.totalorder %s32, 1
      %p118 = por %p116, %p117
      %p120 = scmp.ne.s32.totalorder %s105, %s119
      %p121 = scmp.eq.s32.totalorder %s32, 0
      %p122 = por %p120, %p121
      %s124 = sadd.s32 %s123, 1
      %p127 = scmp.eq.s32.totalorder %s26, 1
      %p128 = scmp.ne.s32.totalorder %s123, %s125
      %p129 = scmp.eq.s32.totalorder %s26, 0
      %p130 = por %p128, %p129
      %p131 = scmp.ne.s32.totalorder %s123, %s125
      %p132 = scmp.eq.s32.totalorder %s31, 1
      %p133 = por %p131, %p132
      %p134 = scmp.ne.s32.totalorder %s125, %s126
      %p135 = scmp.eq.s32.totalorder %s31, 0
      %p136 = por %p134, %p135
      %p137 = scmp.ne.s32.totalorder %s125, %s126
      %p138 = scmp.eq.s32.totalorder %s32, 1
      %p139 = por %p137, %p138
      %p141 = scmp.ne.s32.totalorder %s126, %s140
      %p142 = scmp.eq.s32.totalorder %s32, 0
      %p143 = por %p141, %p142
      %s145 = sadd.s32 %s144, 1
      %p148 = scmp.eq.s32.totalorder %s26, 1
      %p149 = scmp.ne.s32.totalorder %s144, %s146
      %p150 = scmp.eq.s32.totalorder %s26, 0
      %p151 = por %p149, %p150
      %p152 = scmp.ne.s32.totalorder %s144, %s146
      %p153 = scmp.eq.s32.totalorder %s31, 1
      %p154 = por %p152, %p153
      %p155 = scmp.ne.s32.totalorder %s146, %s147
      %p156 = scmp.eq.s32.totalorder %s31, 0
      %p157 = por %p155, %p156
      %p158 = scmp.ne.s32.totalorder %s146, %s147
      %p159 = scmp.eq.s32.totalorder %s32, 1
      %p160 = por %p158, %p159
      %p162 = scmp.ne.s32.totalorder %s147, %s161
      %p163 = scmp.eq.s32.totalorder %s32, 0
      %p164 = por %p162, %p163
      %s166 = sadd.s32 %s165, 1
      %p169 = scmp.eq.s32.totalorder %s26, 1
      %p170 = scmp.ne.s32.totalorder %s165, %s167
      %p171 = scmp.eq.s32.totalorder %s26, 0
      %p172 = por %p170, %p171
      %p173 = scmp.ne.s32.totalorder %s165, %s167
      %p174 = scmp.eq.s32.totalorder %s31, 1
      %p175 = por %p173, %p174
      %p176 = scmp.ne.s32.totalorder %s167, %s168
      %p177 = scmp.eq.s32.totalorder %s31, 0
      %p178 = por %p176, %p177
      %p179 = scmp.ne.s32.totalorder %s167, %s168
      %p180 = scmp.eq.s32.totalorder %s32, 1
      %p181 = por %p179, %p180
      %p183 = scmp.ne.s32.totalorder %s168, %s182
      %p184 = scmp.eq.s32.totalorder %s32, 0
      %p185 = por %p183, %p184
      %s187 = sadd.s32 %s186, 1
      %p190 = scmp.eq.s32.totalorder %s26, 1
      %p191 = scmp.ne.s32.totalorder %s186, %s188
      %p192 = scmp.eq.s32.totalorder %s26, 0
      %p193 = por %p191, %p192
      %p194 = scmp.ne.s32.totalorder %s186, %s188
      %p195 = scmp.eq.s32.totalorder %s31, 1
      %p196 = por %p194, %p195
      %p197 = scmp.ne.s32.totalorder %s188, %s189
      %p198 = scmp.eq.s32.totalorder %s31, 0
      %p199 = por %p197, %p198
      %p200 = scmp.ne.s32.totalorder %s188, %s189
      %p201 = scmp.eq.s32.totalorder %s32, 1
      %p202 = por %p200, %p201
      %p204 = scmp.ne.s32.totalorder %s189, %s203
      %p205 = scmp.eq.s32.totalorder %s32, 0
      %p206 = por %p204, %p205
      %s208 = sadd.s32 %s207, 1
      %p211 = scmp.eq.s32.totalorder %s26, 1
      %p212 = scmp.ne.s32.totalorder %s207, %s209
      %p213 = scmp.eq.s32.totalorder %s26, 0
      %p214 = por %p212, %p213
      %p215 = scmp.ne.s32.totalorder %s207, %s209
      %p216 = scmp.eq.s32.totalorder %s31, 1
      %p217 = por %p215, %p216
      %p218 = scmp.ne.s32.totalorder %s209, %s210
      %p219 = scmp.eq.s32.totalorder %s31, 0
      %p220 = por %p218, %p219
      %p221 = scmp.ne.s32.totalorder %s209, %s210
      %p222 = scmp.eq.s32.totalorder %s32, 1
      %p223 = por %p221, %p222
      %p225 = scmp.ne.s32.totalorder %s210, %s224
      %p226 = scmp.eq.s32.totalorder %s32, 0
      %p227 = por %p225, %p226
      %s228 = ssub.s32 %s26, %s33
      %p229 = scmp.eq.s32.totalorder %s228, 0
      %s231 = sadd.s32 %s230, 1
      %s232 = scalar_select %p229, %s230, %s231
      %p235 = pneg %p229
      %p236 = scmp.eq.s32.totalorder %s26, 1
      %p237 = por %p235, %p236
      %p238 = scmp.ne.s32.totalorder %s230, %s233
      %p239 = scmp.eq.s32.totalorder %s26, 0
      %p240 = por %p238, %p239
      %p241 = scmp.ne.s32.totalorder %s230, %s233
      %p242 = scmp.eq.s32.totalorder %s31, 1
      %p243 = por %p241, %p242
      %p244 = scmp.ne.s32.totalorder %s233, %s234
      %p245 = scmp.eq.s32.totalorder %s31, 0
      %p246 = por %p244, %p245
      %p247 = scmp.ne.s32.totalorder %s233, %s234
      %p248 = scmp.eq.s32.totalorder %s32, 1
      %p249 = por %p247, %p248
      %p251 = scmp.ne.s32.totalorder %s234, %s250
      %p252 = scmp.eq.s32.totalorder %s32, 0
      %p253 = por %p251, %p252
      %s254 = ssub.s32 %s26, %s33
      %p255 = scmp.eq.s32.totalorder %s254, 0
      %s257 = sadd.s32 %s256, 1
      %s258 = scalar_select %p255, %s256, %s257
      %p261 = pneg %p255
      %p262 = scmp.eq.s32.totalorder %s26, 1
      %p263 = por %p261, %p262
      %p264 = scmp.ne.s32.totalorder %s256, %s259
      %p265 = scmp.eq.s32.totalorder %s26, 0
      %p266 = por %p264, %p265
      %p267 = scmp.ne.s32.totalorder %s256, %s259
      %p268 = scmp.eq.s32.totalorder %s31, 1
      %p269 = por %p267, %p268
      %p270 = scmp.ne.s32.totalorder %s259, %s260
      %p271 = scmp.eq.s32.totalorder %s31, 0
      %p272 = por %p270, %p271
      %p273 = scmp.ne.s32.totalorder %s259, %s260
      %p274 = scmp.eq.s32.totalorder %s32, 1
      %p275 = por %p273, %p274
      %p277 = scmp.ne.s32.totalorder %s260, %s276
      %p278 = scmp.eq.s32.totalorder %s32, 0
      %p279 = por %p277, %p278
      %s280 = ssub.s32 %s26, %s33
      %p281 = scmp.eq.s32.totalorder %s280, 0
      %s283 = sadd.s32 %s282, 1
      %s284 = scalar_select %p281, %s282, %s283
      %p287 = pneg %p281
      %p288 = scmp.eq.s32.totalorder %s26, 1
      %p289 = por %p287, %p288
      %p290 = scmp.ne.s32.totalorder %s282, %s285
      %p291 = scmp.eq.s32.totalorder %s26, 0
      %p292 = por %p290, %p291
      %p293 = scmp.ne.s32.totalorder %s282, %s285
      %p294 = scmp.eq.s32.totalorder %s31, 1
      %p295 = por %p293, %p294
      %p296 = scmp.ne.s32.totalorder %s285, %s286
      %p297 = scmp.eq.s32.totalorder %s31, 0
      %p298 = por %p296, %p297
      %p299 = scmp.ne.s32.totalorder %s285, %s286
      %p300 = scmp.eq.s32.totalorder %s32, 1
      %p301 = por %p299, %p300
      %p303 = scmp.ne.s32.totalorder %s286, %s302
      %p304 = scmp.eq.s32.totalorder %s32, 0
      %p305 = por %p303, %p304
      %p306 = scmp.le.s32.totalorder 1, %s26
      %p307 = scmp.lt.s32.totalorder %s26, 3
      %p308 = pnand %p306, %p307
      %p309 = pneg %p308
      // Predicated region
      $region9: #{tpu_custom_call.1} parent=5 // pred_check
        _
      $region10: #{tpu_custom_call.1} parent=5 // pred_check_branch
        %311 = sbr.rel (%p308) target = $region12
      $region11: #{tpu_custom_call.1} parent=5 // pred_region
        %s312 = ssub.s32 %s26, 1
        // Predicated region
        $region13: #{tpu_custom_call.1} parent=11 // pred_check
          %p313 = pneg %p73
        $region14: #{tpu_custom_call.1} parent=11 // pred_check_branch
          %315 = sbr.rel (%p313) target = $region16
        $region15: #{tpu_custom_call.1} parent=11 // pred_region
          _
        $region16: #{tpu_custom_call.1} parent=11 // pred_fallthru
          _
        // Predicated region
        $region17: #{tpu_custom_call.1} parent=11 // pred_check
          %p316 = pneg %p94
        $region18: #{tpu_custom_call.1} parent=11 // pred_check_branch
          %318 = sbr.rel (%p316) target = $region20
        $region19: #{tpu_custom_call.1} parent=11 // pred_region
          %s320 = ssub.s32 16, 16
          %321 = vsyncadd [#allocation3], %s320
          %s323 = sshll.u32 [#allocation2], 4
          %s324 = int_to_ptr.vmem [resolvable:$true] %s323
          %326 = dma.hbm_to_vmem [thread:$0]  %s2, 16, %s324, [#allocation3]
        $region20: #{tpu_custom_call.1} parent=11 // pred_fallthru
          _
        // Predicated region
        $region21: #{tpu_custom_call.1} parent=11 // pred_check
          %p327 = pneg %p115
        $region22: #{tpu_custom_call.1} parent=11 // pred_check_branch
          %329 = sbr.rel (%p327) target = $region24
        $region23: #{tpu_custom_call.1} parent=11 // pred_region
          _
        $region24: #{tpu_custom_call.1} parent=11 // pred_fallthru
          _
        // Predicated region
        $region25: #{tpu_custom_call.1} parent=11 // pred_check
          %p330 = pneg %p136
        $region26: #{tpu_custom_call.1} parent=11 // pred_check_branch
          %332 = sbr.rel (%p330) target = $region28
        $region27: #{tpu_custom_call.1} parent=11 // pred_region
          _
        $region28: #{tpu_custom_call.1} parent=11 // pred_fallthru
          _
        // Predicated region
        $region29: #{tpu_custom_call.1} parent=11 // pred_check
          %p333 = pneg %p157
        $region30: #{tpu_custom_call.1} parent=11 // pred_check_branch
          %335 = sbr.rel (%p333) target = $region32
        $region31: #{tpu_custom_call.1} parent=11 // pred_region
          %s337 = ssub.s32 512, 512
          %338 = vsyncadd [#allocation6], %s337
          %s339 = sshll.u32 [#allocation5], 4
          %s340 = int_to_ptr.vmem [resolvable:$true] %s339
          %345 = dma.hbm_to_vmem [thread:$0]  %s5, 512, %s340, [#allocation6], 64, 64, 4
        $region32: #{tpu_custom_call.1} parent=11 // pred_fallthru
          _
        // Predicated region
        $region33: #{tpu_custom_call.1} parent=11 // pred_check
          %p346 = pneg %p178
        $region34: #{tpu_custom_call.1} parent=11 // pred_check_branch
          %348 = sbr.rel (%p346) target = $region36
        $region35: #{tpu_custom_call.1} parent=11 // pred_region
          _
        $region36: #{tpu_custom_call.1} parent=11 // pred_fallthru
          _
        // Predicated region
        $region37: #{tpu_custom_call.1} parent=11 // pred_check
          %p349 = pneg %p199
        $region38: #{tpu_custom_call.1} parent=11 // pred_check_branch
          %351 = sbr.rel (%p349) target = $region40
        $region39: #{tpu_custom_call.1} parent=11 // pred_region
          %s353 = ssub.s32 1024, 1024
          %354 = vsyncadd [#allocation6], %s353
          %s355 = sshll.u32 [#allocation7], 4
          %s356 = int_to_ptr.vmem [resolvable:$true] %s355
          %361 = dma.hbm_to_vmem [thread:$0]  %s7, 1024, %s356, [#allocation6], 64, 64, 4
        $region40: #{tpu_custom_call.1} parent=11 // pred_fallthru
          _
        // Predicated region
        $region41: #{tpu_custom_call.1} parent=11 // pred_check
          %p362 = pneg %p220
        $region42: #{tpu_custom_call.1} parent=11 // pred_check_branch
          %364 = sbr.rel (%p362) target = $region44
        $region43: #{tpu_custom_call.1} parent=11 // pred_region
          _
        $region44: #{tpu_custom_call.1} parent=11 // pred_fallthru
          _
      $region12: #{tpu_custom_call.1} parent=5 // pred_fallthru
        _
      %p365 = scmp.lt.s32.totalorder %s26, 2
      // Predicated region
      $region45: #{tpu_custom_call.1} parent=5 // pred_check
        %p366 = pneg %p365
      $region46: #{tpu_custom_call.1} parent=5 // pred_check_branch
        %368 = sbr.rel (%p366) target = $region48
      $region47: #{tpu_custom_call.1} parent=5 // pred_region
        // Predicated region
        $region49: #{tpu_custom_call.1} parent=47 // pred_check
          %p369 = pneg %p46
        $region50: #{tpu_custom_call.1} parent=47 // pred_check_branch
          %371 = sbr.rel (%p369) target = $region52
        $region51: #{tpu_custom_call.1} parent=47 // pred_region
          %s372 = smul.u32 16, %s26
          %p373 = scmp.lt.s32.totalorder %s372, 31
          %s374 = scalar_select %p373, %s372, 31
          %s375 = smul.addr %s374, 8
          %s376 = scalar_lea.vmem %s0, %s375
          %s377 = smul.u32 16, %s26
        $region52: #{tpu_custom_call.1} parent=47 // pred_fallthru
          _
        // Predicated region
        $region53: #{tpu_custom_call.1} parent=47 // pred_check
          %p378 = pneg %p240
        $region54: #{tpu_custom_call.1} parent=47 // pred_check_branch
          %380 = sbr.rel (%p378) target = $region56
        $region55: #{tpu_custom_call.1} parent=47 // pred_region
          %s381 = smul.u32 16, %s26
          %p382 = scmp.lt.s32.totalorder %s381, 31
          %s383 = scalar_select %p382, %s381, 31
          %s384 = smul.addr %s383, 8
          %s385 = scalar_lea.vmem %s9, %s384
          %s386 = smul.u32 16, %s26
        $region56: #{tpu_custom_call.1} parent=47 // pred_fallthru
          _
      $region48: #{tpu_custom_call.1} parent=5 // pred_fallthru
        _
      %p387 = scmp.le.s32.totalorder 1, %s26
      %p388 = scmp.lt.s32.totalorder %s26, 3
      %p389 = pnand %p387, %p388
      %p390 = pneg %p389
      // Predicated region
      $region57: #{tpu_custom_call.1} parent=5 // pred_check
        _
      $region58: #{tpu_custom_call.1} parent=5 // pred_check_branch
        %392 = sbr.rel (%p389) target = $region60
      $region59: #{tpu_custom_call.1} parent=5 // pred_region
        %s393 = ssub.s32 %s26, 1
        // Predicated region
        $region61: #{tpu_custom_call.1} parent=59 // pred_check
          %p394 = pneg %p94
        $region62: #{tpu_custom_call.1} parent=59 // pred_check_branch
          %396 = sbr.rel (%p394) target = $region64
        $region63: #{tpu_custom_call.1} parent=59 // pred_region
          %397 = dma.done [#allocation3], 16
        $region64: #{tpu_custom_call.1} parent=59 // pred_fallthru
          _
        // Predicated region
        $region65: #{tpu_custom_call.1} parent=59 // pred_check
          %p398 = pneg %p157
        $region66: #{tpu_custom_call.1} parent=59 // pred_check_branch
          %400 = sbr.rel (%p398) target = $region68
        $region67: #{tpu_custom_call.1} parent=59 // pred_region
          %401 = dma.done [#allocation6], 512
        $region68: #{tpu_custom_call.1} parent=59 // pred_fallthru
          _
        // Predicated region
        $region69: #{tpu_custom_call.1} parent=59 // pred_check
          %p402 = pneg %p199
        $region70: #{tpu_custom_call.1} parent=59 // pred_check_branch
          %404 = sbr.rel (%p402) target = $region72
        $region71: #{tpu_custom_call.1} parent=59 // pred_region
          %405 = dma.done [#allocation6], 1024
        $region72: #{tpu_custom_call.1} parent=59 // pred_fallthru
          _
        %s406 = smul.u32 16, %s31
        %p407 = scmp.lt.s32.totalorder %s406, 31
        %s408 = scalar_select %p407, %s406, 31
        %s409 = smul.addr %s408, 8
        %s410 = scalar_lea.vmem %s0, %s409
        %p411 = pneg %p52
        %p412 = pneg %p49
        %p413 = pneg %p73
        %p414 = pneg %p70
        %p415 = pneg %p94
        %p416 = pneg %p91
        %p417 = pneg %p115
        %p418 = pneg %p112
        %p419 = pneg %p136
        %p420 = pneg %p133
        %p421 = pneg %p157
        %p422 = pneg %p154
        %p423 = pneg %p178
        %p424 = pneg %p175
        %p425 = pneg %p199
        %p426 = pneg %p196
        %p427 = pneg %p220
        %p428 = pneg %p217
        %s429 = smul.u32 16, %s31
        %p430 = scmp.lt.s32.totalorder %s429, 31
        %s431 = scalar_select %p430, %s429, 31
        %s432 = smul.addr %s431, 8
        %s433 = scalar_lea.vmem %s9, %s432
        %p434 = pneg %p246
        %p435 = pneg %p243
        %p436 = pneg %p272
        %p437 = pneg %p269
        %s438 = sand.u32 %s259, 1
        %s439 = scalar_lea.sflag [#allocation4], %s438
        %s440 = sand.u32 %s259, 1
        %s441 = smul.addr %s440, 128
        %s442 = scalar_lea.vmem [#allocation8], %s441
        %p443 = pneg %p298
        %p444 = pneg %p295
        %s445 = sand.u32 %s285, 1
        %s446 = scalar_lea.sflag [#allocation10], %s445
        %s447 = sand.u32 %s285, 1
        %s448 = smul.addr %s447, 128
        %s449 = scalar_lea.vmem [#allocation9], %s448
        %s450 = smul.u32 16, %s31
        %p451 = scmp.lt.s32.totalorder %s450, 31
        %s452 = scalar_select %p451, %s450, 31
        %s453 = smul.addr %s452, 8
        %s454 = scalar_lea.vmem %s0, %s453
        %s455 = smul.u32 16, %s31
        %s456 = smul.u32 16, %s31
        %p457 = scmp.lt.s32.totalorder %s456, 31
        %s458 = scalar_select %p457, %s456, 31
        %s459 = smul.addr %s458, 8
        %s460 = scalar_lea.vmem %s9, %s459
        %s461 = smul.u32 16, %s31
        %s462 = smul.u32 16, %s31
        %s463 = smul.u32 16, %s31
        %v465 = vld [vmem:[%s454] sm:$0xff]
        %v466 = vld [vmem:[%s454 + $0x8] sm:$0xff]
        %v467 = vld [vmem:[%s454 + $0x10] sm:$0xff]
        %v468 = vld [vmem:[%s454 + $0x18] sm:$0xff]
        %v469 = vld [vmem:[%s454 + $0x20] sm:$0xff]
        %v470 = vld [vmem:[%s454 + $0x28] sm:$0xff]
        %v471 = vld [vmem:[%s454 + $0x30] sm:$0xff]
        %v472 = vld [vmem:[%s454 + $0x38] sm:$0xff]
        %v473 = vld [vmem:[%s454 + $0x40] sm:$0xff]
        %v474 = vld [vmem:[%s454 + $0x48] sm:$0xff]
        %v475 = vld [vmem:[%s454 + $0x50] sm:$0xff]
        %v476 = vld [vmem:[%s454 + $0x58] sm:$0xff]
        %v477 = vld [vmem:[%s454 + $0x60] sm:$0xff]
        %v478 = vld [vmem:[%s454 + $0x68] sm:$0xff]
        %v479 = vld [vmem:[%s454 + $0x70] sm:$0xff]
        %v480 = vld [vmem:[%s454 + $0x78] sm:$0xff]
        %v481 = vpack.c.bf16 %v466, %v465
        %v482 = vpack.c.bf16 %v468, %v467
        %v483 = vpack.c.bf16 %v470, %v469
        %v484 = vpack.c.bf16 %v472, %v471
        %v485 = vpack.c.bf16 %v474, %v473
        %v486 = vpack.c.bf16 %v476, %v475
        %v487 = vpack.c.bf16 %v478, %v477
        %v488 = vpack.c.bf16 %v480, %v479
        %v489 = vld [vmem:[%s1] sm:$0xf]
        %v490 = vld [vmem:[%s1 + $0x4] sm:$0xf]
        %v491 = vld [vmem:[%s1 + $0x8] sm:$0xf]
        %v492 = vld [vmem:[%s1 + $0xc] sm:$0xf]
        %v493 = vld [vmem:[%s1 + $0x10] sm:$0xf]
        %v494 = vld [vmem:[%s1 + $0x14] sm:$0xf]
        %v495 = vld [vmem:[%s1 + $0x18] sm:$0xf]
        %v496 = vld [vmem:[%s1 + $0x1c] sm:$0xf]
        %v497 = vld [vmem:[%s1 + $0x20] sm:$0xf]
        %v498 = vld [vmem:[%s1 + $0x24] sm:$0xf]
        %v499 = vld [vmem:[%s1 + $0x28] sm:$0xf]
        %v500 = vld [vmem:[%s1 + $0x2c] sm:$0xf]
        %v501 = vld [vmem:[%s1 + $0x30] sm:$0xf]
        %v502 = vld [vmem:[%s1 + $0x34] sm:$0xf]
        %v503 = vld [vmem:[%s1 + $0x38] sm:$0xf]
        %v504 = vld [vmem:[%s1 + $0x3c] sm:$0xf]
        %v505 = vld [vmem:[#allocation2] sm:$0x1]
        %v507 = vlaneseq
        %v508 = vshrl.u32 %v507, 7
        %v509 = vsub.s32 0, %v508
        %v510 = vrot.slane %v505, %v509
        %v528 = vunpack.c.l.b16 %v489
        %v529 = vunpack.c.l.b16 %v490
        %v530 = vunpack.c.l.b16 %v491
        %v531 = vunpack.c.l.b16 %v492
        %v532 = vunpack.c.l.b16 %v493
        %v533 = vunpack.c.l.b16 %v494
        %v534 = vunpack.c.l.b16 %v495
        %v535 = vunpack.c.l.b16 %v496
        %v536 = vunpack.c.l.b16 %v497
        %v537 = vunpack.c.l.b16 %v498
        %v538 = vunpack.c.l.b16 %v499
        %v539 = vunpack.c.l.b16 %v500
        %v540 = vunpack.c.l.b16 %v501
        %v541 = vunpack.c.l.b16 %v502
        %v542 = vunpack.c.l.b16 %v503
        %v543 = vunpack.c.l.b16 %v504
        %v544 = vpack.c.b16 %v529, %v528
        %v545 = vpack.c.b16 %v531, %v530
        %v546 = vpack.c.b16 %v533, %v532
        %v547 = vpack.c.b16 %v535, %v534
        %v548 = vpack.c.b16 %v537, %v536
        %v549 = vpack.c.b16 %v539, %v538
        %v550 = vpack.c.b16 %v541, %v540
        %v551 = vpack.c.b16 %v543, %v542
        %560 = vmatprep.subr.bf16.mxu0 0
        %561 = vmatpush1.bf16.msra.mxu0 %v551
        %562 = vmatprep.subr.bf16.mxu0 0
        %563 = vmatpush1.bf16.msra.mxu0 %v550
        %564 = vmatprep.subr.bf16.mxu0 0
        %565 = vmatpush1.bf16.msra.mxu0 %v549
        %566 = vmatprep.subr.bf16.mxu0 0
        %567 = vmatpush1.bf16.msra.mxu0 %v548
        %568 = vmatprep.subr.bf16.mxu0 0
        %569 = vmatpush1.bf16.msra.mxu0 %v547
        %570 = vmatprep.subr.bf16.mxu0 0
        %571 = vmatpush1.bf16.msra.mxu0 %v546
        %572 = vmatprep.subr.bf16.mxu0 0
        %573 = vmatpush1.bf16.msra.mxu0 %v545
        %574 = vmatprep.subr.bf16.mxu0 0
        %575 = vmatpush1.bf16.msra.mxu0 %v544
        %576 = vmatprep.subr.bf16.mxu0 0
        %577 = vmatpush2.bf16.msra.mxu0 0
        %578 = vmatprep.subr.bf16.mxu0 0
        %579 = vmatpush2.bf16.msra.mxu0 0
        %580 = vmatprep.subr.bf16.mxu0 0
        %581 = vmatpush2.bf16.msra.mxu0 0
        %582 = vmatprep.subr.bf16.mxu0 0
        %583 = vmatpush2.bf16.msra.mxu0 0
        %584 = vmatprep.subr.bf16.mxu0 0
        %585 = vmatpush2.bf16.msra.mxu0 0
        %586 = vmatprep.subr.bf16.mxu0 0
        %587 = vmatpush2.bf16.msra.mxu0 0
        %588 = vmatprep.subr.bf16.mxu0 0
        %589 = vmatpush2.bf16.msra.mxu0 0
        %590 = vmatprep.subr.bf16.mxu0 0
        %591 = vmatpush2.bf16.msra.mxu0 0
        %592 = vmatprep.mubr.bf16.mxu0 0
        %593 = vmatmul.mubr.bf16.gmra.mxu0 %v481
        %v594 = vpop.f32.mrf.mxu0
        %v595 = vadd.f32 %v510, %v594
        %v596 = vpop.f32.mrf.mxu0
        %v597 = vpop.f32.mrf.mxu0
        %v598 = vadd.f32 %v510, %v597
        %v599 = vpop.f32.mrf.mxu0
        %600 = vmatprep.mubr.bf16.mxu0 0
        %601 = vmatmul.mubr.bf16.gmra.mxu0 %v482
        %v602 = vpop.f32.mrf.mxu0
        %v603 = vadd.f32 %v510, %v602
        %v604 = vpop.f32.mrf.mxu0
        %v605 = vpop.f32.mrf.mxu0
        %v606 = vadd.f32 %v510, %v605
        %v607 = vpop.f32.mrf.mxu0
        %608 = vmatprep.mubr.bf16.mxu0 0
        %609 = vmatmul.mubr.bf16.gmra.mxu0 %v483
        %v610 = vpop.f32.mrf.mxu0
        %v611 = vadd.f32 %v510, %v610
        %v612 = vpop.f32.mrf.mxu0
        %v613 = vpop.f32.mrf.mxu0
        %v614 = vadd.f32 %v510, %v613
        %v615 = vpop.f32.mrf.mxu0
        %616 = vmatprep.mubr.bf16.mxu0 0
        %617 = vmatmul.mubr.bf16.gmra.mxu0 %v484
        %v618 = vpop.f32.mrf.mxu0
        %v619 = vadd.f32 %v510, %v618
        %v620 = vpop.f32.mrf.mxu0
        %v621 = vpop.f32.mrf.mxu0
        %v622 = vadd.f32 %v510, %v621
        %v623 = vpop.f32.mrf.mxu0
        %624 = vmatprep.mubr.bf16.mxu0 0
        %625 = vmatmul.mubr.bf16.gmra.mxu0 %v485
        %v626 = vpop.f32.mrf.mxu0
        %v627 = vadd.f32 %v510, %v626
        %v628 = vpop.f32.mrf.mxu0
        %v629 = vpop.f32.mrf.mxu0
        %v630 = vadd.f32 %v510, %v629
        %v631 = vpop.f32.mrf.mxu0
        %632 = vmatprep.mubr.bf16.mxu0 0
        %633 = vmatmul.mubr.bf16.gmra.mxu0 %v486
        %v634 = vpop.f32.mrf.mxu0
        %v635 = vadd.f32 %v510, %v634
        %v636 = vpop.f32.mrf.mxu0
        %v637 = vpop.f32.mrf.mxu0
        %v638 = vadd.f32 %v510, %v637
        %v639 = vpop.f32.mrf.mxu0
        %640 = vmatprep.mubr.bf16.mxu0 0
        %641 = vmatmul.mubr.bf16.gmra.mxu0 %v487
        %v642 = vpop.f32.mrf.mxu0
        %v643 = vadd.f32 %v510, %v642
        %v644 = vpop.f32.mrf.mxu0
        %v645 = vpop.f32.mrf.mxu0
        %v646 = vadd.f32 %v510, %v645
        %v647 = vpop.f32.mrf.mxu0
        %648 = vmatprep.mubr.bf16.mxu0 0
        %649 = vmatmul.mubr.bf16.gmra.mxu0 %v488
        %v650 = vpop.f32.mrf.mxu0
        %v651 = vadd.f32 %v510, %v650
        %v652 = vpop.f32.mrf.mxu0
        %v653 = vpop.f32.mrf.mxu0
        %v654 = vadd.f32 %v510, %v653
        %v655 = vpop.f32.mrf.mxu0
        %656 = vdwg.mxu0
        %v657 = vmax.f32 %v595, 0.0
        %v658 = vmax.f32 %v598, 0.0
        %v659 = vmax.f32 %v603, 0.0
        %v660 = vmax.f32 %v606, 0.0
        %v661 = vmax.f32 %v611, 0.0
        %v662 = vmax.f32 %v614, 0.0
        %v663 = vmax.f32 %v619, 0.0
        %v664 = vmax.f32 %v622, 0.0
        %v665 = vmax.f32 %v627, 0.0
        %v666 = vmax.f32 %v630, 0.0
        %v667 = vmax.f32 %v635, 0.0
        %v668 = vmax.f32 %v638, 0.0
        %v669 = vmax.f32 %v643, 0.0
        %v670 = vmax.f32 %v646, 0.0
        %v671 = vmax.f32 %v651, 0.0
        %v672 = vmax.f32 %v654, 0.0
        %v673 = vpack.c.bf16 %v658, %v657
        %v674 = vpack.c.bf16 %v660, %v659
        %v675 = vpack.c.bf16 %v662, %v661
        %v676 = vpack.c.bf16 %v664, %v663
        %v677 = vpack.c.bf16 %v666, %v665
        %v678 = vpack.c.bf16 %v668, %v667
        %v679 = vpack.c.bf16 %v670, %v669
        %v680 = vpack.c.bf16 %v672, %v671
        %v681 = vld [vmem:[%s3] sm:$0xf]
        %v682 = vld [vmem:[%s3 + $0x4] sm:$0xf]
        %v683 = vld [vmem:[%s3 + $0x8] sm:$0xf]
        %v684 = vld [vmem:[%s3 + $0xc] sm:$0xf]
        %v685 = vld [vmem:[%s3 + $0x10] sm:$0xf]
        %v686 = vld [vmem:[%s3 + $0x14] sm:$0xf]
        %v687 = vld [vmem:[%s3 + $0x18] sm:$0xf]
        %v688 = vld [vmem:[%s3 + $0x1c] sm:$0xf]
        %v689 = vld [vmem:[%s3 + $0x20] sm:$0xf]
        %v690 = vld [vmem:[%s3 + $0x24] sm:$0xf]
        %v691 = vld [vmem:[%s3 + $0x28] sm:$0xf]
        %v692 = vld [vmem:[%s3 + $0x2c] sm:$0xf]
        %v693 = vld [vmem:[%s3 + $0x30] sm:$0xf]
        %v694 = vld [vmem:[%s3 + $0x34] sm:$0xf]
        %v695 = vld [vmem:[%s3 + $0x38] sm:$0xf]
        %v696 = vld [vmem:[%s3 + $0x3c] sm:$0xf]
        %v697 = vld [vmem:[%s4] sm:$0x1]
        %v699 = vlaneseq
        %v700 = vshrl.u32 %v699, 7
        %v701 = vsub.s32 0, %v700
        %v702 = vrot.slane %v697, %v701
        %v720 = vunpack.c.l.b16 %v681
        %v721 = vunpack.c.l.b16 %v682
        %v722 = vunpack.c.l.b16 %v683
        %v723 = vunpack.c.l.b16 %v684
        %v724 = vunpack.c.l.b16 %v685
        %v725 = vunpack.c.l.b16 %v686
        %v726 = vunpack.c.l.b16 %v687
        %v727 = vunpack.c.l.b16 %v688
        %v728 = vunpack.c.l.b16 %v689
        %v729 = vunpack.c.l.b16 %v690
        %v730 = vunpack.c.l.b16 %v691
        %v731 = vunpack.c.l.b16 %v692
        %v732 = vunpack.c.l.b16 %v693
        %v733 = vunpack.c.l.b16 %v694
        %v734 = vunpack.c.l.b16 %v695
        %v735 = vunpack.c.l.b16 %v696
        %v736 = vpack.c.b16 %v721, %v720
        %v737 = vpack.c.b16 %v723, %v722
        %v738 = vpack.c.b16 %v725, %v724
        %v739 = vpack.c.b16 %v727, %v726
        %v740 = vpack.c.b16 %v729, %v728
        %v741 = vpack.c.b16 %v731, %v730
        %v742 = vpack.c.b16 %v733, %v732
        %v743 = vpack.c.b16 %v735, %v734
        %752 = vmatprep.subr.bf16.mxu0 0
        %753 = vmatpush1.bf16.msra.mxu0 %v743
        %754 = vmatprep.subr.bf16.mxu0 0
        %755 = vmatpush1.bf16.msra.mxu0 %v742
        %756 = vmatprep.subr.bf16.mxu0 0
        %757 = vmatpush1.bf16.msra.mxu0 %v741
        %758 = vmatprep.subr.bf16.mxu0 0
        %759 = vmatpush1.bf16.msra.mxu0 %v740
        %760 = vmatprep.subr.bf16.mxu0 0
        %761 = vmatpush1.bf16.msra.mxu0 %v739
        %762 = vmatprep.subr.bf16.mxu0 0
        %763 = vmatpush1.bf16.msra.mxu0 %v738
        %764 = vmatprep.subr.bf16.mxu0 0
        %765 = vmatpush1.bf16.msra.mxu0 %v737
        %766 = vmatprep.subr.bf16.mxu0 0
        %767 = vmatpush1.bf16.msra.mxu0 %v736
        %768 = vmatprep.subr.bf16.mxu0 0
        %769 = vmatpush2.bf16.msra.mxu0 0
        %770 = vmatprep.subr.bf16.mxu0 0
        %771 = vmatpush2.bf16.msra.mxu0 0
        %772 = vmatprep.subr.bf16.mxu0 0
        %773 = vmatpush2.bf16.msra.mxu0 0
        %774 = vmatprep.subr.bf16.mxu0 0
        %775 = vmatpush2.bf16.msra.mxu0 0
        %776 = vmatprep.subr.bf16.mxu0 0
        %777 = vmatpush2.bf16.msra.mxu0 0
        %778 = vmatprep.subr.bf16.mxu0 0
        %779 = vmatpush2.bf16.msra.mxu0 0
        %780 = vmatprep.subr.bf16.mxu0 0
        %781 = vmatpush2.bf16.msra.mxu0 0
        %782 = vmatprep.subr.bf16.mxu0 0
        %783 = vmatpush2.bf16.msra.mxu0 0
        %784 = vmatprep.mubr.bf16.mxu0 0
        %785 = vmatmul.mubr.bf16.gmra.mxu0 %v673
        %v786 = vpop.f32.mrf.mxu0
        %v787 = vadd.f32 %v702, %v786
        %v788 = vpop.f32.mrf.mxu0
        %v789 = vpop.f32.mrf.mxu0
        %v790 = vadd.f32 %v702, %v789
        %v791 = vpop.f32.mrf.mxu0
        %792 = vmatprep.mubr.bf16.mxu0 0
        %793 = vmatmul.mubr.bf16.gmra.mxu0 %v674
        %v794 = vpop.f32.mrf.mxu0
        %v795 = vadd.f32 %v702, %v794
        %v796 = vpop.f32.mrf.mxu0
        %v797 = vpop.f32.mrf.mxu0
        %v798 = vadd.f32 %v702, %v797
        %v799 = vpop.f32.mrf.mxu0
        %800 = vmatprep.mubr.bf16.mxu0 0
        %801 = vmatmul.mubr.bf16.gmra.mxu0 %v675
        %v802 = vpop.f32.mrf.mxu0
        %v803 = vadd.f32 %v702, %v802
        %v804 = vpop.f32.mrf.mxu0
        %v805 = vpop.f32.mrf.mxu0
        %v806 = vadd.f32 %v702, %v805
        %v807 = vpop.f32.mrf.mxu0
        %808 = vmatprep.mubr.bf16.mxu0 0
        %809 = vmatmul.mubr.bf16.gmra.mxu0 %v676
        %v810 = vpop.f32.mrf.mxu0
        %v811 = vadd.f32 %v702, %v810
        %v812 = vpop.f32.mrf.mxu0
        %v813 = vpop.f32.mrf.mxu0
        %v814 = vadd.f32 %v702, %v813
        %v815 = vpop.f32.mrf.mxu0
        %816 = vmatprep.mubr.bf16.mxu0 0
        %817 = vmatmul.mubr.bf16.gmra.mxu0 %v677
        %v818 = vpop.f32.mrf.mxu0
        %v819 = vadd.f32 %v702, %v818
        %v820 = vpop.f32.mrf.mxu0
        %v821 = vpop.f32.mrf.mxu0
        %v822 = vadd.f32 %v702, %v821
        %v823 = vpop.f32.mrf.mxu0
        %824 = vmatprep.mubr.bf16.mxu0 0
        %825 = vmatmul.mubr.bf16.gmra.mxu0 %v678
        %v826 = vpop.f32.mrf.mxu0
        %v827 = vadd.f32 %v702, %v826
        %v828 = vpop.f32.mrf.mxu0
        %v829 = vpop.f32.mrf.mxu0
        %v830 = vadd.f32 %v702, %v829
        %v831 = vpop.f32.mrf.mxu0
        %832 = vmatprep.mubr.bf16.mxu0 0
        %833 = vmatmul.mubr.bf16.gmra.mxu0 %v679
        %v834 = vpop.f32.mrf.mxu0
        %v835 = vadd.f32 %v702, %v834
        %v836 = vpop.f32.mrf.mxu0
        %v837 = vpop.f32.mrf.mxu0
        %v838 = vadd.f32 %v702, %v837
        %v839 = vpop.f32.mrf.mxu0
        %840 = vmatprep.mubr.bf16.mxu0 0
        %841 = vmatmul.mubr.bf16.gmra.mxu0 %v680
        %v842 = vpop.f32.mrf.mxu0
        %v843 = vadd.f32 %v702, %v842
        %v844 = vpop.f32.mrf.mxu0
        %v845 = vpop.f32.mrf.mxu0
        %v846 = vadd.f32 %v702, %v845
        %v847 = vpop.f32.mrf.mxu0
        %848 = vdwg.mxu0
        %v849 = vmul.f32 %v787, 0.5
        %v850 = vmul.f32 %v790, 0.5
        %v851 = vmul.f32 %v795, 0.5
        %v852 = vmul.f32 %v798, 0.5
        %v853 = vmul.f32 %v803, 0.5
        %v854 = vmul.f32 %v806, 0.5
        %v855 = vmul.f32 %v811, 0.5
        %v856 = vmul.f32 %v814, 0.5
        %v857 = vmul.f32 %v819, 0.5
        %v858 = vmul.f32 %v822, 0.5
        %v859 = vmul.f32 %v827, 0.5
        %v860 = vmul.f32 %v830, 0.5
        %v861 = vmul.f32 %v835, 0.5
        %v862 = vmul.f32 %v838, 0.5
        %v863 = vmul.f32 %v843, 0.5
        %v864 = vmul.f32 %v846, 0.5
        %v865 = vmul.f32 %v849, 1.442695
        %v866 = vpow.pop %v865
        %v867 = vmul.f32 %v850, 1.442695
        %v868 = vpow.pop %v867
        %v869 = vmul.f32 %v851, 1.442695
        %v870 = vpow.pop %v869
        %v871 = vmul.f32 %v852, 1.442695
        %v872 = vpow.pop %v871
        %v873 = vmul.f32 %v853, 1.442695
        %v874 = vpow.pop %v873
        %v875 = vmul.f32 %v854, 1.442695
        %v876 = vpow.pop %v875
        %v877 = vmul.f32 %v855, 1.442695
        %v878 = vpow.pop %v877
        %v879 = vmul.f32 %v856, 1.442695
        %v880 = vpow.pop %v879
        %v881 = vmul.f32 %v857, 1.442695
        %v882 = vpow.pop %v881
        %v883 = vmul.f32 %v858, 1.442695
        %v884 = vpow.pop %v883
        %v885 = vmul.f32 %v859, 1.442695
        %v886 = vpow.pop %v885
        %v887 = vmul.f32 %v860, 1.442695
        %v888 = vpow.pop %v887
        %v889 = vmul.f32 %v861, 1.442695
        %v890 = vpow.pop %v889
        %v891 = vmul.f32 %v862, 1.442695
        %v892 = vpow.pop %v891
        %v893 = vmul.f32 %v863, 1.442695
        %v894 = vpow.pop %v893
        %v895 = vmul.f32 %v864, 1.442695
        %v896 = vpow.pop %v895
        %v897 = vld [vmem:[%s460] sm:$0xff]
        %v898 = vld [vmem:[%s460 + $0x8] sm:$0xff]
        %v899 = vld [vmem:[%s460 + $0x10] sm:$0xff]
        %v900 = vld [vmem:[%s460 + $0x18] sm:$0xff]
        %v901 = vld [vmem:[%s460 + $0x20] sm:$0xff]
        %v902 = vld [vmem:[%s460 + $0x28] sm:$0xff]
        %v903 = vld [vmem:[%s460 + $0x30] sm:$0xff]
        %v904 = vld [vmem:[%s460 + $0x38] sm:$0xff]
        %v905 = vld [vmem:[%s460 + $0x40] sm:$0xff]
        %v906 = vld [vmem:[%s460 + $0x48] sm:$0xff]
        %v907 = vld [vmem:[%s460 + $0x50] sm:$0xff]
        %v908 = vld [vmem:[%s460 + $0x58] sm:$0xff]
        %v909 = vld [vmem:[%s460 + $0x60] sm:$0xff]
        %v910 = vld [vmem:[%s460 + $0x68] sm:$0xff]
        %v911 = vld [vmem:[%s460 + $0x70] sm:$0xff]
        %v912 = vld [vmem:[%s460 + $0x78] sm:$0xff]
        %929 = vrot.lane.b32.xlu0 %v897, 64
        %v930 = vpop.permute.xlu0 %929
        %931 = vrot.lane.b32.xlu0 %v898, 64
        %v932 = vpop.permute.xlu0 %931
        %933 = vrot.lane.b32.xlu0 %v899, 64
        %v934 = vpop.permute.xlu0 %933
        %935 = vrot.lane.b32.xlu0 %v900, 64
        %v936 = vpop.permute.xlu0 %935
        %937 = vrot.lane.b32.xlu0 %v901, 64
        %v938 = vpop.permute.xlu0 %937
        %939 = vrot.lane.b32.xlu0 %v902, 64
        %v940 = vpop.permute.xlu0 %939
        %941 = vrot.lane.b32.xlu0 %v903, 64
        %v942 = vpop.permute.xlu0 %941
        %943 = vrot.lane.b32.xlu0 %v904, 64
        %v944 = vpop.permute.xlu0 %943
        %945 = vrot.lane.b32.xlu0 %v905, 64
        %v946 = vpop.permute.xlu0 %945
        %947 = vrot.lane.b32.xlu0 %v906, 64
        %v948 = vpop.permute.xlu0 %947
        %949 = vrot.lane.b32.xlu0 %v907, 64
        %v950 = vpop.permute.xlu0 %949
        %951 = vrot.lane.b32.xlu0 %v908, 64
        %v952 = vpop.permute.xlu0 %951
        %953 = vrot.lane.b32.xlu0 %v909, 64
        %v954 = vpop.permute.xlu0 %953
        %955 = vrot.lane.b32.xlu0 %v910, 64
        %v956 = vpop.permute.xlu0 %955
        %957 = vrot.lane.b32.xlu0 %v911, 64
        %v958 = vpop.permute.xlu0 %957
        %959 = vrot.lane.b32.xlu0 %v912, 64
        %v960 = vpop.permute.xlu0 %959
        %v977 = vmul.f32 %v866, %v930
        %v978 = vmul.f32 %v868, %v932
        %v979 = vmul.f32 %v870, %v934
        %v980 = vmul.f32 %v872, %v936
        %v981 = vmul.f32 %v874, %v938
        %v982 = vmul.f32 %v876, %v940
        %v983 = vmul.f32 %v878, %v942
        %v984 = vmul.f32 %v880, %v944
        %v985 = vmul.f32 %v882, %v946
        %v986 = vmul.f32 %v884, %v948
        %v987 = vmul.f32 %v886, %v950
        %v988 = vmul.f32 %v888, %v952
        %v989 = vmul.f32 %v890, %v954
        %v990 = vmul.f32 %v892, %v956
        %v991 = vmul.f32 %v894, %v958
        %v992 = vmul.f32 %v896, %v960
        %1009 = vrot.lane.b32.xlu0 %v977, 64
        %v1010 = vpop.permute.xlu0 %1009
        %1011 = vrot.lane.b32.xlu0 %v978, 64
        %v1012 = vpop.permute.xlu0 %1011
        %1013 = vrot.lane.b32.xlu0 %v979, 64
        %v1014 = vpop.permute.xlu0 %1013
        %1015 = vrot.lane.b32.xlu0 %v980, 64
        %v1016 = vpop.permute.xlu0 %1015
        %1017 = vrot.lane.b32.xlu0 %v981, 64
        %v1018 = vpop.permute.xlu0 %1017
        %1019 = vrot.lane.b32.xlu0 %v982, 64
        %v1020 = vpop.permute.xlu0 %1019
        %1021 = vrot.lane.b32.xlu0 %v983, 64
        %v1022 = vpop.permute.xlu0 %1021
        %1023 = vrot.lane.b32.xlu0 %v984, 64
        %v1024 = vpop.permute.xlu0 %1023
        %1025 = vrot.lane.b32.xlu0 %v985, 64
        %v1026 = vpop.permute.xlu0 %1025
        %1027 = vrot.lane.b32.xlu0 %v986, 64
        %v1028 = vpop.permute.xlu0 %1027
        %1029 = vrot.lane.b32.xlu0 %v987, 64
        %v1030 = vpop.permute.xlu0 %1029
        %1031 = vrot.lane.b32.xlu0 %v988, 64
        %v1032 = vpop.permute.xlu0 %1031
        %1033 = vrot.lane.b32.xlu0 %v989, 64
        %v1034 = vpop.permute.xlu0 %1033
        %1035 = vrot.lane.b32.xlu0 %v990, 64
        %v1036 = vpop.permute.xlu0 %1035
        %1037 = vrot.lane.b32.xlu0 %v991, 64
        %v1038 = vpop.permute.xlu0 %1037
        %1039 = vrot.lane.b32.xlu0 %v992, 64
        %v1040 = vpop.permute.xlu0 %1039
        %v1057 = vadd.f32 %v787, %v1010
        %v1058 = vadd.f32 %v790, %v1012
        %v1059 = vadd.f32 %v795, %v1014
        %v1060 = vadd.f32 %v798, %v1016
        %v1061 = vadd.f32 %v803, %v1018
        %v1062 = vadd.f32 %v806, %v1020
        %v1063 = vadd.f32 %v811, %v1022
        %v1064 = vadd.f32 %v814, %v1024
        %v1065 = vadd.f32 %v819, %v1026
        %v1066 = vadd.f32 %v822, %v1028
        %v1067 = vadd.f32 %v827, %v1030
        %v1068 = vadd.f32 %v830, %v1032
        %v1069 = vadd.f32 %v835, %v1034
        %v1070 = vadd.f32 %v838, %v1036
        %v1071 = vadd.f32 %v843, %v1038
        %v1072 = vadd.f32 %v846, %v1040
        %v1073 = vpack.c.bf16 %v1058, %v1057
        %v1074 = vpack.c.bf16 %v1060, %v1059
        %v1075 = vpack.c.bf16 %v1062, %v1061
        %v1076 = vpack.c.bf16 %v1064, %v1063
        %v1077 = vpack.c.bf16 %v1066, %v1065
        %v1078 = vpack.c.bf16 %v1068, %v1067
        %v1079 = vpack.c.bf16 %v1070, %v1069
        %v1080 = vpack.c.bf16 %v1072, %v1071
        %v1081 = vld [vmem:[#allocation5] sm:$0xf]
        %v1082 = vld [vmem:[#allocation5 + $0x4] sm:$0xf]
        %v1083 = vld [vmem:[#allocation5 + $0x8] sm:$0xf]
        %v1084 = vld [vmem:[#allocation5 + $0xc] sm:$0xf]
        %v1085 = vld [vmem:[#allocation5 + $0x10] sm:$0xf]
        %v1086 = vld [vmem:[#allocation5 + $0x14] sm:$0xf]
        %v1087 = vld [vmem:[#allocation5 + $0x18] sm:$0xf]
        %v1088 = vld [vmem:[#allocation5 + $0x1c] sm:$0xf]
        %v1089 = vld [vmem:[%s6] sm:$0x1]
        %v1091 = vlaneseq
        %v1092 = vshrl.u32 %v1091, 7
        %v1093 = vsub.s32 0, %v1092
        %v1094 = vrot.slane %v1089, %v1093
        %v1104 = vunpack.c.l.b16 %v1081
        %v1105 = vunpack.c.l.b16 %v1082
        %v1106 = vunpack.c.l.b16 %v1083
        %v1107 = vunpack.c.l.b16 %v1084
        %v1108 = vunpack.c.l.b16 %v1085
        %v1109 = vunpack.c.l.b16 %v1086
        %v1110 = vunpack.c.l.b16 %v1087
        %v1111 = vunpack.c.l.b16 %v1088
        %v1112 = vpack.c.b16 %v1105, %v1104
        %v1113 = vpack.c.b16 %v1107, %v1106
        %v1114 = vpack.c.b16 %v1109, %v1108
        %v1115 = vpack.c.b16 %v1111, %v1110
        %vm1120 = vcmask 523264
        %v1122 = vsel %vm1120, %v1073, 0
        %v1125 = vsel %vm1120, %v1074, 0
        %v1128 = vsel %vm1120, %v1075, 0
        %v1131 = vsel %vm1120, %v1076, 0
        %v1134 = vsel %vm1120, %v1077, 0
        %v1137 = vsel %vm1120, %v1078, 0
        %v1140 = vsel %vm1120, %v1079, 0
        %v1143 = vsel %vm1120, %v1080, 0
        %1145 = vmatprep.subr.bf16.mxu0 0
        %1146 = vmatpush1.bf16.msra.mxu0 0
        %1147 = vmatprep.subr.bf16.mxu0 0
        %1148 = vmatpush1.bf16.msra.mxu0 0
        %1149 = vmatprep.subr.bf16.mxu0 0
        %1150 = vmatpush1.bf16.msra.mxu0 0
        %1151 = vmatprep.subr.bf16.mxu0 0
        %1152 = vmatpush1.bf16.msra.mxu0 0
        %1153 = vmatprep.subr.bf16.mxu0 0
        %1154 = vmatpush1.bf16.msra.mxu0 %v1115
        %1155 = vmatprep.subr.bf16.mxu0 0
        %1156 = vmatpush1.bf16.msra.mxu0 %v1114
        %1157 = vmatprep.subr.bf16.mxu0 0
        %1158 = vmatpush1.bf16.msra.mxu0 %v1113
        %1159 = vmatprep.subr.bf16.mxu0 0
        %1160 = vmatpush1.bf16.msra.mxu0 %v1112
        %1161 = vmatprep.subr.bf16.mxu0 0
        %1162 = vmatpush2.bf16.msra.mxu0 0
        %1163 = vmatprep.subr.bf16.mxu0 0
        %1164 = vmatpush2.bf16.msra.mxu0 0
        %1165 = vmatprep.subr.bf16.mxu0 0
        %1166 = vmatpush2.bf16.msra.mxu0 0
        %1167 = vmatprep.subr.bf16.mxu0 0
        %1168 = vmatpush2.bf16.msra.mxu0 0
        %1169 = vmatprep.subr.bf16.mxu0 0
        %1170 = vmatpush2.bf16.msra.mxu0 0
        %1171 = vmatprep.subr.bf16.mxu0 0
        %1172 = vmatpush2.bf16.msra.mxu0 0
        %1173 = vmatprep.subr.bf16.mxu0 0
        %1174 = vmatpush2.bf16.msra.mxu0 0
        %1175 = vmatprep.subr.bf16.mxu0 0
        %1176 = vmatpush2.bf16.msra.mxu0 0
        %1177 = vmatprep.mubr.bf16.mxu0 0
        %1178 = vmatmul.mubr.bf16.gmra.mxu0 %v1122
        %v1179 = vpop.f32.mrf.mxu0
        %v1180 = vadd.f32 %v1094, %v1179
        %v1181 = vpop.f32.mrf.mxu0
        %v1182 = vpop.f32.mrf.mxu0
        %v1183 = vadd.f32 %v1094, %v1182
        %v1184 = vpop.f32.mrf.mxu0
        %1185 = vmatprep.mubr.bf16.mxu0 0
        %1186 = vmatmul.mubr.bf16.gmra.mxu0 %v1125
        %v1187 = vpop.f32.mrf.mxu0
        %v1188 = vadd.f32 %v1094, %v1187
        %v1189 = vpop.f32.mrf.mxu0
        %v1190 = vpop.f32.mrf.mxu0
        %v1191 = vadd.f32 %v1094, %v1190
        %v1192 = vpop.f32.mrf.mxu0
        %1193 = vmatprep.mubr.bf16.mxu0 0
        %1194 = vmatmul.mubr.bf16.gmra.mxu0 %v1128
        %v1195 = vpop.f32.mrf.mxu0
        %v1196 = vadd.f32 %v1094, %v1195
        %v1197 = vpop.f32.mrf.mxu0
        %v1198 = vpop.f32.mrf.mxu0
        %v1199 = vadd.f32 %v1094, %v1198
        %v1200 = vpop.f32.mrf.mxu0
        %1201 = vmatprep.mubr.bf16.mxu0 0
        %1202 = vmatmul.mubr.bf16.gmra.mxu0 %v1131
        %v1203 = vpop.f32.mrf.mxu0
        %v1204 = vadd.f32 %v1094, %v1203
        %v1205 = vpop.f32.mrf.mxu0
        %v1206 = vpop.f32.mrf.mxu0
        %v1207 = vadd.f32 %v1094, %v1206
        %v1208 = vpop.f32.mrf.mxu0
        %1209 = vmatprep.mubr.bf16.mxu0 0
        %1210 = vmatmul.mubr.bf16.gmra.mxu0 %v1134
        %v1211 = vpop.f32.mrf.mxu0
        %v1212 = vadd.f32 %v1094, %v1211
        %v1213 = vpop.f32.mrf.mxu0
        %v1214 = vpop.f32.mrf.mxu0
        %v1215 = vadd.f32 %v1094, %v1214
        %v1216 = vpop.f32.mrf.mxu0
        %1217 = vmatprep.mubr.bf16.mxu0 0
        %1218 = vmatmul.mubr.bf16.gmra.mxu0 %v1137
        %v1219 = vpop.f32.mrf.mxu0
        %v1220 = vadd.f32 %v1094, %v1219
        %v1221 = vpop.f32.mrf.mxu0
        %v1222 = vpop.f32.mrf.mxu0
        %v1223 = vadd.f32 %v1094, %v1222
        %v1224 = vpop.f32.mrf.mxu0
        %1225 = vmatprep.mubr.bf16.mxu0 0
        %1226 = vmatmul.mubr.bf16.gmra.mxu0 %v1140
        %v1227 = vpop.f32.mrf.mxu0
        %v1228 = vadd.f32 %v1094, %v1227
        %v1229 = vpop.f32.mrf.mxu0
        %v1230 = vpop.f32.mrf.mxu0
        %v1231 = vadd.f32 %v1094, %v1230
        %v1232 = vpop.f32.mrf.mxu0
        %1233 = vmatprep.mubr.bf16.mxu0 0
        %1234 = vmatmul.mubr.bf16.gmra.mxu0 %v1143
        %v1235 = vpop.f32.mrf.mxu0
        %v1236 = vadd.f32 %v1094, %v1235
        %v1237 = vpop.f32.mrf.mxu0
        %v1238 = vpop.f32.mrf.mxu0
        %v1239 = vadd.f32 %v1094, %v1238
        %v1240 = vpop.f32.mrf.mxu0
        %1241 = vdwg.mxu0
        %v1242 = vmax.f32 %v1180, 0.0
        %v1243 = vmax.f32 %v1183, 0.0
        %v1244 = vmax.f32 %v1188, 0.0
        %v1245 = vmax.f32 %v1191, 0.0
        %v1246 = vmax.f32 %v1196, 0.0
        %v1247 = vmax.f32 %v1199, 0.0
        %v1248 = vmax.f32 %v1204, 0.0
        %v1249 = vmax.f32 %v1207, 0.0
        %v1250 = vmax.f32 %v1212, 0.0
        %v1251 = vmax.f32 %v1215, 0.0
        %v1252 = vmax.f32 %v1220, 0.0
        %v1253 = vmax.f32 %v1223, 0.0
        %v1254 = vmax.f32 %v1228, 0.0
        %v1255 = vmax.f32 %v1231, 0.0
        %v1256 = vmax.f32 %v1236, 0.0
        %v1257 = vmax.f32 %v1239, 0.0
        %v1258 = vpack.c.bf16 %v1243, %v1242
        %v1259 = vpack.c.bf16 %v1245, %v1244
        %v1260 = vpack.c.bf16 %v1247, %v1246
        %v1261 = vpack.c.bf16 %v1249, %v1248
        %v1262 = vpack.c.bf16 %v1251, %v1250
        %v1263 = vpack.c.bf16 %v1253, %v1252
        %v1264 = vpack.c.bf16 %v1255, %v1254
        %v1265 = vpack.c.bf16 %v1257, %v1256
        %v1266 = vld [vmem:[#allocation7] sm:$0xf]
        %v1267 = vld [vmem:[#allocation7 + $0x4] sm:$0xf]
        %v1268 = vld [vmem:[#allocation7 + $0x8] sm:$0xf]
        %v1269 = vld [vmem:[#allocation7 + $0xc] sm:$0xf]
        %v1270 = vld [vmem:[#allocation7 + $0x10] sm:$0xf]
        %v1271 = vld [vmem:[#allocation7 + $0x14] sm:$0xf]
        %v1272 = vld [vmem:[#allocation7 + $0x18] sm:$0xf]
        %v1273 = vld [vmem:[#allocation7 + $0x1c] sm:$0xf]
        %v1274 = vld [vmem:[#allocation7 + $0x20] sm:$0xf]
        %v1275 = vld [vmem:[#allocation7 + $0x24] sm:$0xf]
        %v1276 = vld [vmem:[#allocation7 + $0x28] sm:$0xf]
        %v1277 = vld [vmem:[#allocation7 + $0x2c] sm:$0xf]
        %v1278 = vld [vmem:[#allocation7 + $0x30] sm:$0xf]
        %v1279 = vld [vmem:[#allocation7 + $0x34] sm:$0xf]
        %v1280 = vld [vmem:[#allocation7 + $0x38] sm:$0xf]
        %v1281 = vld [vmem:[#allocation7 + $0x3c] sm:$0xf]
        %v1282 = vld [vmem:[%s8] sm:$0x1]
        %v1284 = vlaneseq
        %v1285 = vshrl.u32 %v1284, 7
        %v1286 = vsub.s32 0, %v1285
        %v1287 = vrot.slane %v1282, %v1286
        %v1305 = vunpack.c.l.b16 %v1266
        %v1306 = vunpack.c.l.b16 %v1267
        %v1307 = vunpack.c.l.b16 %v1268
        %v1308 = vunpack.c.l.b16 %v1269
        %v1309 = vunpack.c.l.b16 %v1270
        %v1310 = vunpack.c.l.b16 %v1271
        %v1311 = vunpack.c.l.b16 %v1272
        %v1312 = vunpack.c.l.b16 %v1273
        %v1313 = vunpack.c.l.b16 %v1274
        %v1314 = vunpack.c.l.b16 %v1275
        %v1315 = vunpack.c.l.b16 %v1276
        %v1316 = vunpack.c.l.b16 %v1277
        %v1317 = vunpack.c.l.b16 %v1278
        %v1318 = vunpack.c.l.b16 %v1279
        %v1319 = vunpack.c.l.b16 %v1280
        %v1320 = vunpack.c.l.b16 %v1281
        %v1321 = vpack.c.b16 %v1306, %v1305
        %v1322 = vpack.c.b16 %v1308, %v1307
        %v1323 = vpack.c.b16 %v1310, %v1309
        %v1324 = vpack.c.b16 %v1312, %v1311
        %v1325 = vpack.c.b16 %v1314, %v1313
        %v1326 = vpack.c.b16 %v1316, %v1315
        %v1327 = vpack.c.b16 %v1318, %v1317
        %v1328 = vpack.c.b16 %v1320, %v1319
        %1337 = vmatprep.subr.bf16.mxu0 0
        %1338 = vmatpush1.bf16.msra.mxu0 %v1328
        %1339 = vmatprep.subr.bf16.mxu0 0
        %1340 = vmatpush1.bf16.msra.mxu0 %v1327
        %1341 = vmatprep.subr.bf16.mxu0 0
        %1342 = vmatpush1.bf16.msra.mxu0 %v1326
        %1343 = vmatprep.subr.bf16.mxu0 0
        %1344 = vmatpush1.bf16.msra.mxu0 %v1325
        %1345 = vmatprep.subr.bf16.mxu0 0
        %1346 = vmatpush1.bf16.msra.mxu0 %v1324
        %1347 = vmatprep.subr.bf16.mxu0 0
        %1348 = vmatpush1.bf16.msra.mxu0 %v1323
        %1349 = vmatprep.subr.bf16.mxu0 0
        %1350 = vmatpush1.bf16.msra.mxu0 %v1322
        %1351 = vmatprep.subr.bf16.mxu0 0
        %1352 = vmatpush1.bf16.msra.mxu0 %v1321
        %1353 = vmatprep.subr.bf16.mxu0 0
        %1354 = vmatpush2.bf16.msra.mxu0 0
        %1355 = vmatprep.subr.bf16.mxu0 0
        %1356 = vmatpush2.bf16.msra.mxu0 0
        %1357 = vmatprep.subr.bf16.mxu0 0
        %1358 = vmatpush2.bf16.msra.mxu0 0
        %1359 = vmatprep.subr.bf16.mxu0 0
        %1360 = vmatpush2.bf16.msra.mxu0 0
        %1361 = vmatprep.subr.bf16.mxu0 0
        %1362 = vmatpush2.bf16.msra.mxu0 0
        %1363 = vmatprep.subr.bf16.mxu0 0
        %1364 = vmatpush2.bf16.msra.mxu0 0
        %1365 = vmatprep.subr.bf16.mxu0 0
        %1366 = vmatpush2.bf16.msra.mxu0 0
        %1367 = vmatprep.subr.bf16.mxu0 0
        %1368 = vmatpush2.bf16.msra.mxu0 0
        %1369 = vmatprep.mubr.bf16.mxu0 0
        %1370 = vmatmul.mubr.bf16.gmra.mxu0 %v1258
        %v1371 = vpop.f32.mrf.mxu0
        %v1372 = vadd.f32 %v1287, %v1371
        %v1373 = vpop.f32.mrf.mxu0
        %v1374 = vpop.f32.mrf.mxu0
        %v1375 = vadd.f32 %v1287, %v1374
        %v1376 = vpop.f32.mrf.mxu0
        %1377 = vmatprep.mubr.bf16.mxu0 0
        %1378 = vmatmul.mubr.bf16.gmra.mxu0 %v1259
        %v1379 = vpop.f32.mrf.mxu0
        %v1380 = vadd.f32 %v1287, %v1379
        %v1381 = vpop.f32.mrf.mxu0
        %v1382 = vpop.f32.mrf.mxu0
        %v1383 = vadd.f32 %v1287, %v1382
        %v1384 = vpop.f32.mrf.mxu0
        %1385 = vmatprep.mubr.bf16.mxu0 0
        %1386 = vmatmul.mubr.bf16.gmra.mxu0 %v1260
        %v1387 = vpop.f32.mrf.mxu0
        %v1388 = vadd.f32 %v1287, %v1387
        %v1389 = vpop.f32.mrf.mxu0
        %v1390 = vpop.f32.mrf.mxu0
        %v1391 = vadd.f32 %v1287, %v1390
        %v1392 = vpop.f32.mrf.mxu0
        %1393 = vmatprep.mubr.bf16.mxu0 0
        %1394 = vmatmul.mubr.bf16.gmra.mxu0 %v1261
        %v1395 = vpop.f32.mrf.mxu0
        %v1396 = vadd.f32 %v1287, %v1395
        %v1397 = vpop.f32.mrf.mxu0
        %v1398 = vpop.f32.mrf.mxu0
        %v1399 = vadd.f32 %v1287, %v1398
        %v1400 = vpop.f32.mrf.mxu0
        %1401 = vmatprep.mubr.bf16.mxu0 0
        %1402 = vmatmul.mubr.bf16.gmra.mxu0 %v1262
        %v1403 = vpop.f32.mrf.mxu0
        %v1404 = vadd.f32 %v1287, %v1403
        %v1405 = vpop.f32.mrf.mxu0
        %v1406 = vpop.f32.mrf.mxu0
        %v1407 = vadd.f32 %v1287, %v1406
        %v1408 = vpop.f32.mrf.mxu0
        %1409 = vmatprep.mubr.bf16.mxu0 0
        %1410 = vmatmul.mubr.bf16.gmra.mxu0 %v1263
        %v1411 = vpop.f32.mrf.mxu0
        %v1412 = vadd.f32 %v1287, %v1411
        %v1413 = vpop.f32.mrf.mxu0
        %v1414 = vpop.f32.mrf.mxu0
        %v1415 = vadd.f32 %v1287, %v1414
        %v1416 = vpop.f32.mrf.mxu0
        %1417 = vmatprep.mubr.bf16.mxu0 0
        %1418 = vmatmul.mubr.bf16.gmra.mxu0 %v1264
        %v1419 = vpop.f32.mrf.mxu0
        %v1420 = vadd.f32 %v1287, %v1419
        %v1421 = vpop.f32.mrf.mxu0
        %v1422 = vpop.f32.mrf.mxu0
        %v1423 = vadd.f32 %v1287, %v1422
        %v1424 = vpop.f32.mrf.mxu0
        %1425 = vmatprep.mubr.bf16.mxu0 0
        %1426 = vmatmul.mubr.bf16.gmra.mxu0 %v1265
        %v1427 = vpop.f32.mrf.mxu0
        %v1428 = vadd.f32 %v1287, %v1427
        %v1429 = vpop.f32.mrf.mxu0
        %v1430 = vpop.f32.mrf.mxu0
        %v1431 = vadd.f32 %v1287, %v1430
        %v1432 = vpop.f32.mrf.mxu0
        %1433 = vdwg.mxu0
        %v1434 = vxor.u32 %v1372, 2147483648
        %v1435 = vxor.u32 %v1375, 2147483648
        %v1436 = vxor.u32 %v1380, 2147483648
        %v1437 = vxor.u32 %v1383, 2147483648
        %v1438 = vxor.u32 %v1388, 2147483648
        %v1439 = vxor.u32 %v1391, 2147483648
        %v1440 = vxor.u32 %v1396, 2147483648
        %v1441 = vxor.u32 %v1399, 2147483648
        %v1442 = vxor.u32 %v1404, 2147483648
        %v1443 = vxor.u32 %v1407, 2147483648
        %v1444 = vxor.u32 %v1412, 2147483648
        %v1445 = vxor.u32 %v1415, 2147483648
        %v1446 = vxor.u32 %v1420, 2147483648
        %v1447 = vxor.u32 %v1423, 2147483648
        %v1448 = vxor.u32 %v1428, 2147483648
        %v1449 = vxor.u32 %v1431, 2147483648
        %v1450 = vmul.f32 %v1434, 1.442695
        %v1451 = vpow.pop %v1450
        %v1452 = vmul.f32 %v1435, 1.442695
        %v1453 = vpow.pop %v1452
        %v1454 = vmul.f32 %v1436, 1.442695
        %v1455 = vpow.pop %v1454
        %v1456 = vmul.f32 %v1437, 1.442695
        %v1457 = vpow.pop %v1456
        %v1458 = vmul.f32 %v1438, 1.442695
        %v1459 = vpow.pop %v1458
        %v1460 = vmul.f32 %v1439, 1.442695
        %v1461 = vpow.pop %v1460
        %v1462 = vmul.f32 %v1440, 1.442695
        %v1463 = vpow.pop %v1462
        %v1464 = vmul.f32 %v1441, 1.442695
        %v1465 = vpow.pop %v1464
        %v1466 = vmul.f32 %v1442, 1.442695
        %v1467 = vpow.pop %v1466
        %v1468 = vmul.f32 %v1443, 1.442695
        %v1469 = vpow.pop %v1468
        %v1470 = vmul.f32 %v1444, 1.442695
        %v1471 = vpow.pop %v1470
        %v1472 = vmul.f32 %v1445, 1.442695
        %v1473 = vpow.pop %v1472
        %v1474 = vmul.f32 %v1446, 1.442695
        %v1475 = vpow.pop %v1474
        %v1476 = vmul.f32 %v1447, 1.442695
        %v1477 = vpow.pop %v1476
        %v1478 = vmul.f32 %v1448, 1.442695
        %v1479 = vpow.pop %v1478
        %v1480 = vmul.f32 %v1449, 1.442695
        %v1481 = vpow.pop %v1480
        %v1482 = vadd.f32 %v1451, 1.0
        %v1483 = vadd.f32 %v1453, 1.0
        %v1484 = vadd.f32 %v1455, 1.0
        %v1485 = vadd.f32 %v1457, 1.0
        %v1486 = vadd.f32 %v1459, 1.0
        %v1487 = vadd.f32 %v1461, 1.0
        %v1488 = vadd.f32 %v1463, 1.0
        %v1489 = vadd.f32 %v1465, 1.0
        %v1490 = vadd.f32 %v1467, 1.0
        %v1491 = vadd.f32 %v1469, 1.0
        %v1492 = vadd.f32 %v1471, 1.0
        %v1493 = vadd.f32 %v1473, 1.0
        %v1494 = vadd.f32 %v1475, 1.0
        %v1495 = vadd.f32 %v1477, 1.0
        %v1496 = vadd.f32 %v1479, 1.0
        %v1497 = vadd.f32 %v1481, 1.0
        %v1498 = vrcp.pop %v1482
        %v1499 = vmul.f32 1.0, %v1498
        %v1500 = vrcp.pop %v1483
        %v1501 = vmul.f32 1.0, %v1500
        %v1502 = vrcp.pop %v1484
        %v1503 = vmul.f32 1.0, %v1502
        %v1504 = vrcp.pop %v1485
        %v1505 = vmul.f32 1.0, %v1504
        %v1506 = vrcp.pop %v1486
        %v1507 = vmul.f32 1.0, %v1506
        %v1508 = vrcp.pop %v1487
        %v1509 = vmul.f32 1.0, %v1508
        %v1510 = vrcp.pop %v1488
        %v1511 = vmul.f32 1.0, %v1510
        %v1512 = vrcp.pop %v1489
        %v1513 = vmul.f32 1.0, %v1512
        %v1514 = vrcp.pop %v1490
        %v1515 = vmul.f32 1.0, %v1514
        %v1516 = vrcp.pop %v1491
        %v1517 = vmul.f32 1.0, %v1516
        %v1518 = vrcp.pop %v1492
        %v1519 = vmul.f32 1.0, %v1518
        %v1520 = vrcp.pop %v1493
        %v1521 = vmul.f32 1.0, %v1520
        %v1522 = vrcp.pop %v1494
        %v1523 = vmul.f32 1.0, %v1522
        %v1524 = vrcp.pop %v1495
        %v1525 = vmul.f32 1.0, %v1524
        %v1526 = vrcp.pop %v1496
        %v1527 = vmul.f32 1.0, %v1526
        %v1528 = vrcp.pop %v1497
        %v1529 = vmul.f32 1.0, %v1528
        %1530 = vst [vmem:[%s442] sm:$0xff] %v1499
        %1531 = vst [vmem:[%s442 + $0x8] sm:$0xff] %v1501
        %1532 = vst [vmem:[%s442 + $0x10] sm:$0xff] %v1503
        %1533 = vst [vmem:[%s442 + $0x18] sm:$0xff] %v1505
        %1534 = vst [vmem:[%s442 + $0x20] sm:$0xff] %v1507
        %1535 = vst [vmem:[%s442 + $0x28] sm:$0xff] %v1509
        %1536 = vst [vmem:[%s442 + $0x30] sm:$0xff] %v1511
        %1537 = vst [vmem:[%s442 + $0x38] sm:$0xff] %v1513
        %1538 = vst [vmem:[%s442 + $0x40] sm:$0xff] %v1515
        %1539 = vst [vmem:[%s442 + $0x48] sm:$0xff] %v1517
        %1540 = vst [vmem:[%s442 + $0x50] sm:$0xff] %v1519
        %1541 = vst [vmem:[%s442 + $0x58] sm:$0xff] %v1521
        %1542 = vst [vmem:[%s442 + $0x60] sm:$0xff] %v1523
        %1543 = vst [vmem:[%s442 + $0x68] sm:$0xff] %v1525
        %1544 = vst [vmem:[%s442 + $0x70] sm:$0xff] %v1527
        %1545 = vst [vmem:[%s442 + $0x78] sm:$0xff] %v1529
        %v1546 = vsel %vm1120, %v787, %v866
        %v1547 = vsel %vm1120, %v790, %v868
        %v1548 = vsel %vm1120, %v795, %v870
        %v1549 = vsel %vm1120, %v798, %v872
        %v1550 = vsel %vm1120, %v803, %v874
        %v1551 = vsel %vm1120, %v806, %v876
        %v1552 = vsel %vm1120, %v811, %v878
        %v1553 = vsel %vm1120, %v814, %v880
        %v1554 = vsel %vm1120, %v819, %v882
        %v1555 = vsel %vm1120, %v822, %v884
        %v1556 = vsel %vm1120, %v827, %v886
        %v1557 = vsel %vm1120, %v830, %v888
        %v1558 = vsel %vm1120, %v835, %v890
        %v1559 = vsel %vm1120, %v838, %v892
        %v1560 = vsel %vm1120, %v843, %v894
        %v1561 = vsel %vm1120, %v846, %v896
        %1562 = vst [vmem:[%s449] sm:$0xff] %v1546
        %1563 = vst [vmem:[%s449 + $0x8] sm:$0xff] %v1547
        %1564 = vst [vmem:[%s449 + $0x10] sm:$0xff] %v1548
        %1565 = vst [vmem:[%s449 + $0x18] sm:$0xff] %v1549
        %1566 = vst [vmem:[%s449 + $0x20] sm:$0xff] %v1550
        %1567 = vst [vmem:[%s449 + $0x28] sm:$0xff] %v1551
        %1568 = vst [vmem:[%s449 + $0x30] sm:$0xff] %v1552
        %1569 = vst [vmem:[%s449 + $0x38] sm:$0xff] %v1553
        %1570 = vst [vmem:[%s449 + $0x40] sm:$0xff] %v1554
        %1571 = vst [vmem:[%s449 + $0x48] sm:$0xff] %v1555
        %1572 = vst [vmem:[%s449 + $0x50] sm:$0xff] %v1556
        %1573 = vst [vmem:[%s449 + $0x58] sm:$0xff] %v1557
        %1574 = vst [vmem:[%s449 + $0x60] sm:$0xff] %v1558
        %1575 = vst [vmem:[%s449 + $0x68] sm:$0xff] %v1559
        %1576 = vst [vmem:[%s449 + $0x70] sm:$0xff] %v1560
        %1577 = vst [vmem:[%s449 + $0x78] sm:$0xff] %v1561
        %s1578 = sand.u32 %s259, 1
        %s1579 = scalar_lea.sflag [#allocation4], %s1578
        %s1580 = sand.u32 %s259, 1
        %s1581 = smul.addr %s1580, 128
        %s1582 = scalar_lea.vmem [#allocation8], %s1581
        %s1583 = sand.u32 %s285, 1
        %s1584 = scalar_lea.sflag [#allocation10], %s1583
        %s1585 = sand.u32 %s285, 1
        %s1586 = smul.addr %s1585, 128
        %s1587 = scalar_lea.vmem [#allocation9], %s1586
        // Predicated region
        $region73: #{tpu_custom_call.1} parent=59 // pred_check
          %p1588 = pneg %p269
        $region74: #{tpu_custom_call.1} parent=59 // pred_check_branch
          %1590 = sbr.rel (%p1588) target = $region76
        $region75: #{tpu_custom_call.1} parent=59 // pred_region
          %s1591 = smul.u32 16, %s31
          %s1593 = ssub.s32 2048, 2048
          %1594 = vsyncadd %s1579, %s1593
          %s1595 = smul.addr %s1591, 128
          %s1596 = scalar_lea.hbm %s10, %s1595
          %s1597 = sshll.u32 %s1582, 4
          %s1598 = int_to_ptr.vmem [resolvable:$true] %s1597
          %1603 = dma.vmem_to_hbm [thread:$0]  %s1598, 2048, %s1596, %s1579, 128, 128, 8
        $region76: #{tpu_custom_call.1} parent=59 // pred_fallthru
          _
        // Predicated region
        $region77: #{tpu_custom_call.1} parent=59 // pred_check
          %p1604 = pneg %p295
        $region78: #{tpu_custom_call.1} parent=59 // pred_check_branch
          %1606 = sbr.rel (%p1604) target = $region80
        $region79: #{tpu_custom_call.1} parent=59 // pred_region
          %s1607 = smul.u32 16, %s31
          %s1609 = ssub.s32 2048, 2048
          %1610 = vsyncadd %s1584, %s1609
          %s1611 = smul.addr %s1607, 128
          %s1612 = scalar_lea.hbm %s11, %s1611
          %s1613 = sshll.u32 %s1587, 4
          %s1614 = int_to_ptr.vmem [resolvable:$true] %s1613
          %1619 = dma.vmem_to_hbm [thread:$0]  %s1614, 2048, %s1612, %s1584, 128, 128, 8
        $region80: #{tpu_custom_call.1} parent=59 // pred_fallthru
          _
      $region60: #{tpu_custom_call.1} parent=5 // pred_fallthru
        _
      %p1620 = scmp.le.s32.totalorder 2, %s26
      // Predicated region
      $region81: #{tpu_custom_call.1} parent=5 // pred_check
        %p1621 = pneg %p1620
      $region82: #{tpu_custom_call.1} parent=5 // pred_check_branch
        %1623 = sbr.rel (%p1621) target = $region84
      $region83: #{tpu_custom_call.1} parent=5 // pred_region
        %s1624 = ssub.s32 %s26, 2
        // Predicated region
        $region85: #{tpu_custom_call.1} parent=83 // pred_check
          %p1625 = pneg %p275
        $region86: #{tpu_custom_call.1} parent=83 // pred_check_branch
          %1627 = sbr.rel (%p1625) target = $region88
        $region87: #{tpu_custom_call.1} parent=83 // pred_region
          %s1628 = sand.u32 %s260, 1
          %s1629 = scalar_lea.sflag [#allocation4], %s1628
          %s1630 = sand.u32 %s260, 1
          %s1631 = smul.addr %s1630, 128
          %s1632 = scalar_lea.vmem [#allocation8], %s1631
          %1633 = dma.done %s1629, 2048
        $region88: #{tpu_custom_call.1} parent=83 // pred_fallthru
          _
        // Predicated region
        $region89: #{tpu_custom_call.1} parent=83 // pred_check
          %p1634 = pneg %p301
        $region90: #{tpu_custom_call.1} parent=83 // pred_check_branch
          %1636 = sbr.rel (%p1634) target = $region92
        $region91: #{tpu_custom_call.1} parent=83 // pred_region
          %s1637 = sand.u32 %s286, 1
          %s1638 = scalar_lea.sflag [#allocation10], %s1637
          %s1639 = sand.u32 %s286, 1
          %s1640 = smul.addr %s1639, 128
          %s1641 = scalar_lea.vmem [#allocation9], %s1640
          %1642 = dma.done %s1638, 2048
        $region92: #{tpu_custom_call.1} parent=83 // pred_fallthru
          _
      $region84: #{tpu_custom_call.1} parent=5 // pred_fallthru
        _
    $region6: #{tpu_custom_call.1} parent=1 // loop_footer
      %s30 = sadd.s32 1, %s26
    $region7: #{tpu_custom_call.1} parent=1 // loop_footer_branch
      %25 = sbr.rel target = $region3
    $region8: #{tpu_custom_call.1} parent=1 // loop_exit
      _
    %1643 = vsyncpa [#allocation3], 1
    %s1644 = scalar_lea.sflag [#allocation3], 1
    %1645 = vsyncpa %s1644, 1
    %1646 = vsyncpa [#allocation6], 1
    %1647 = vsyncpa [#allocation4], 1
    %s1648 = scalar_lea.sflag [#allocation4], 1
    %1649 = vsyncpa %s1648, 1
    %1650 = vsyncpa [#allocation10], 1
    %s1651 = scalar_lea.sflag [#allocation10], 1
    %1652 = vsyncpa %s1651, 1

</llo_original>
